<compile_context>
chip_gen: v7x
topology: tpu7x:2x2x1
jax: 0.10.0
libtpu: 0.0.40
codegen_flags: <defaults>
</compile_context>

<pallas_src>
import functools

import jax
import jax.numpy as jnp
from jax.experimental import pallas as pl
from jax.experimental.pallas import tpu as pltpu

# Original layer widths of the VAE (encoder then decoder).
ENC_DIMS = [28 * 28, 128, 64, 36, 18, 9, 2]
DEC_DIMS = [2, 9, 18, 36, 64, 128, 28 * 28]

D_IN = 28 * 28          # 784
LATENT = 2
D_IN_PAD = 896          # 784 padded to 7 * 128 lanes
HID_PAD = 128           # every hidden / latent dim padded to 128 lanes
D_OUT_PAD = 896         # 784 padded to 7 * 128 lanes

N_MID = 10              # encoder layers 1..5 + decoder layers 0..4 (all <=128 wide)


def _round_up(n, m):
    return ((n + m - 1) // m) * m


def _vae_kernel(x_ref, eps_ref, w_in_ref, w_mid_ref, w_out_ref, b_mid_ref,
                b_out_ref, enc_ref, z_ref, dec_ref):
    bf16 = jnp.bfloat16
    f32 = jnp.float32

    b_mid = b_mid_ref[...]                       # (11, 128) f32, loaded once

    # ---- encoder: (Linear + ReLU) x5, final Linear (no activation) ----
    h = x_ref[...]                                                     # (TB, 896) f32
    h = jnp.dot(h.astype(bf16), w_in_ref[...], preferred_element_type=f32)
    h = jnp.maximum(h + b_mid[0:1, :], 0.0)                            # (TB, 128)
    for i in range(5):                           # mid layers 0..4 == encoder L1..L5
        h = jnp.dot(h.astype(bf16), w_mid_ref[i], preferred_element_type=f32)
        h = h + b_mid[1 + i:2 + i, :]
        if i < 4:
            h = jnp.maximum(h, 0.0)
    enc_ref[...] = h                             # lanes >= LATENT are exactly 0

    # ---- reparameterization: z = mu + exp(mu / 2) * eps ----
    z = h + jnp.exp(h * 0.5) * eps_ref[...]
    z_ref[...] = z

    # ---- decoder: (Linear + ReLU) x5, final Linear + Sigmoid ----
    h = z
    for j in range(5):                           # mid layers 5..9 == decoder L0..L4
        h = jnp.dot(h.astype(bf16), w_mid_ref[5 + j], preferred_element_type=f32)
        h = jnp.maximum(h + b_mid[6 + j:7 + j, :], 0.0)
    h = jnp.dot(h.astype(bf16), w_out_ref[...], preferred_element_type=f32)
    h = h + b_out_ref[...]                                             # (TB, 896)
    dec_ref[...] = jax.nn.sigmoid(h)


def init_params(key):
    """PyTorch-like uniform(-1/sqrt(in), 1/sqrt(in)) init; f32, original shapes."""
    dims = list(zip(ENC_DIMS[:-1], ENC_DIMS[1:])) + list(zip(DEC_DIMS[:-1], DEC_DIMS[1:]))
    params = []
    for (d_in, d_out) in dims:
        key, kw, kb = jax.random.split(key, 3)
        bound = 1.0 / jnp.sqrt(float(d_in))
        w = jax.random.uniform(kw, (d_in, d_out), jnp.float32, -bound, bound)
        b = jax.random.uniform(kb, (d_out,), jnp.float32, -bound, bound)
        params.append((w, b))
    return params


def pack_params(params):
    """Pack the 12 (w, b) pairs into 5 padded, kernel-friendly arrays.

    Weights are zero-padded to lane/sublane-aligned shapes and cast to bf16
    (MXU operands); biases stay f32 (added to the f32 accumulators).
    """
    def pad2(a, rows, cols):
        return jnp.pad(a, ((0, rows - a.shape[0]), (0, cols - a.shape[1])))

    ws = [w for (w, _) in params]
    bs = [b for (_, b) in params]

    w_in = pad2(ws[0], D_IN_PAD, HID_PAD).astype(jnp.bfloat16)            # (896, 128)
    w_mid = jnp.stack(
        [pad2(w, HID_PAD, HID_PAD) for w in ws[1:11]]).astype(jnp.bfloat16)  # (10, 128, 128)
    w_out = pad2(ws[11], HID_PAD, D_OUT_PAD).astype(jnp.bfloat16)         # (128, 896)

    b_mid = jnp.stack([jnp.pad(b, (0, HID_PAD - b.shape[0])) for b in bs[:11]])  # (11, 128)
    b_out = jnp.pad(bs[11], (0, D_OUT_PAD - bs[11].shape[0])).reshape(1, D_OUT_PAD)  # (1, 896)
    return w_in, w_mid, w_out, b_mid, b_out


@functools.partial(jax.jit, static_argnames=("tile_batch",))
def vae_forward(x, eps, packed_params, *, tile_batch=256):
    """Returns (encoded, z, decoded) with the original (unpadded) shapes."""
    w_in, w_mid, w_out, b_mid, b_out = packed_params
    batch = x.shape[0]

    # Batch tile: 256 matches the v6e/v7x MXU geometry (use 128 on v5e);
    # small batches collapse to a single tile.
    tb = min(tile_batch, _round_up(batch, 8))
    b_pad = _round_up(batch, tb)

    x_p = jnp.pad(x.astype(jnp.float32),
                  ((0, b_pad - batch), (0, D_IN_PAD - x.shape[1])))
    eps_p = jnp.pad(eps.astype(jnp.float32),
                    ((0, b_pad - batch), (0, HID_PAD - eps.shape[1])))

    grid = (b_pad // tb,)

    def act_spec(cols):
        return pl.BlockSpec((tb, cols), lambda i: (i, 0))

    def resident(shape):
        return pl.BlockSpec(shape, lambda i: (0,) * len(shape))

    out_shapes = (
        jax.ShapeDtypeStruct((b_pad, HID_PAD), jnp.float32),   # encoded (padded)
        jax.ShapeDtypeStruct((b_pad, HID_PAD), jnp.float32),   # z (padded)
        jax.ShapeDtypeStruct((b_pad, D_OUT_PAD), jnp.float32), # decoded (padded)
    )

    enc_p, z_p, dec_p = pl.pallas_call(
        _vae_kernel,
        out_shape=out_shapes,
        grid=grid,
        in_specs=[
            act_spec(D_IN_PAD),                       # x tile, streamed
            act_spec(HID_PAD),                        # eps tile, streamed
            resident((D_IN_PAD, HID_PAD)),            # w_in, VMEM-resident
            resident((N_MID, HID_PAD, HID_PAD)),      # w_mid, VMEM-resident
            resident((HID_PAD, D_OUT_PAD)),           # w_out, VMEM-resident
            resident((11, HID_PAD)),                  # b_mid, VMEM-resident
            resident((1, D_OUT_PAD)),                 # b_out, VMEM-resident
        ],
        out_specs=(act_spec(HID_PAD), act_spec(HID_PAD), act_spec(D_OUT_PAD)),
        compiler_params=pltpu.CompilerParams(
            dimension_semantics=("parallel",),
        ),
    )(x_p, eps_p, w_in, w_mid, w_out, b_mid, b_out)

    return (enc_p[:batch, :LATENT], z_p[:batch, :LATENT], dec_p[:batch, :D_IN])


def vae_reference(x, eps, params):
    """Pure-JAX f32 reference matching the PyTorch module."""
    h = x
    for i, (w, b) in enumerate(params[:6]):
        h = h @ w + b
        if i < 5:
            h = jnp.maximum(h, 0.0)
    encoded = h
    z = encoded + jnp.exp(encoded * 0.5) * eps
    h = z
    for j, (w, b) in enumerate(params[6:]):
        h = h @ w + b
        if j < 5:
            h = jnp.maximum(h, 0.0)
        else:
            h = jax.nn.sigmoid(h)
    return encoded, z, h


if __name__ == "__main__":
    key = jax.random.PRNGKey(0)
    k_x, k_eps, k_p = jax.random.split(key, 3)

    batch = 12                                  # small; exercises batch padding + a 2-step grid
    x = jax.random.uniform(k_x, (batch, D_IN), jnp.float32)        # MNIST-like in [0, 1)
    eps = jax.random.normal(k_eps, (batch, LATENT), jnp.float32)   # reparameterization noise

    params = init_params(k_p)
    packed = pack_params(params)

    encoded, z, decoded = vae_forward(x, eps, packed, tile_batch=8)
    jax.block_until_ready((encoded, z, decoded))

    assert encoded.shape == (batch, LATENT)
    assert z.shape == (batch, LATENT)
    assert decoded.shape == (batch, D_IN)
    assert bool(jnp.all(jnp.isfinite(decoded)))
    assert bool(jnp.all((decoded >= 0.0) & (decoded <= 1.0)))

    # Cross-check against the pure-JAX f32 reference (loose tolerance: the
    # kernel uses bf16 matmul operands with f32 accumulation).
    enc_ref, z_ref, dec_ref = vae_reference(x, eps, params)
    assert bool(jnp.max(jnp.abs(encoded - enc_ref)) < 1e-1)
    assert bool(jnp.max(jnp.abs(z - z_ref)) < 1e-1)
    assert bool(jnp.max(jnp.abs(decoded - dec_ref)) < 5e-2)

    print("KERNEL_OK")
</pallas_src>

<mosaic_0001>
module attributes {stable_mosaic.version = 11 : i64} {
  func.func @_vae_kernel(%arg0: i32, %arg1: memref<8x896xf32, #tpu.memory_space<vmem>>, %arg2: memref<8x128xf32, #tpu.memory_space<vmem>>, %arg3: memref<896x128xbf16, #tpu.memory_space<vmem>>, %arg4: memref<10x128x128xbf16, #tpu.memory_space<vmem>>, %arg5: memref<128x896xbf16, #tpu.memory_space<vmem>>, %arg6: memref<11x128xf32, #tpu.memory_space<vmem>>, %arg7: memref<1x896xf32, #tpu.memory_space<vmem>>, %arg8: memref<8x128xf32, #tpu.memory_space<vmem>>, %arg9: memref<8x128xf32, #tpu.memory_space<vmem>>, %arg10: memref<8x896xf32, #tpu.memory_space<vmem>>) attributes {dimension_semantics = [#tpu.dimension_semantics<parallel>], iteration_bounds = array<i64: 2>, scalar_prefetch = 0 : i64, scratch_operands = 0 : i64, tpu.core_type = #tpu.core_type<tc>, window_params = [{transform_indices = @transform_0, window_bounds = array<i64: 8, 896>}, {transform_indices = @transform_1, window_bounds = array<i64: 8, 128>}, {pipeline_mode = #tpu.pipeline_mode<synchronous>, transform_indices = @transform_2, window_bounds = array<i64: 896, 128>}, {pipeline_mode = #tpu.pipeline_mode<synchronous>, transform_indices = @transform_3, window_bounds = array<i64: 10, 128, 128>}, {pipeline_mode = #tpu.pipeline_mode<synchronous>, transform_indices = @transform_4, window_bounds = array<i64: 128, 896>}, {pipeline_mode = #tpu.pipeline_mode<synchronous>, transform_indices = @transform_5, window_bounds = array<i64: 11, 128>}, {pipeline_mode = #tpu.pipeline_mode<synchronous>, transform_indices = @transform_6, window_bounds = array<i64: 1, 896>}, {transform_indices = @transform_7, window_bounds = array<i64: 8, 128>}, {transform_indices = @transform_8, window_bounds = array<i64: 8, 128>}, {transform_indices = @transform_9, window_bounds = array<i64: 8, 896>}]} {
    %c0 = arith.constant 0 : index
    %c0_0 = arith.constant 0 : index
    %0 = vector.load %arg6[%c0, %c0_0] : memref<11x128xf32, #tpu.memory_space<vmem>>, vector<11x128xf32>
    %c0_1 = arith.constant 0 : index
    %c0_2 = arith.constant 0 : index
    %1 = vector.load %arg1[%c0_1, %c0_2] : memref<8x896xf32, #tpu.memory_space<vmem>>, vector<8x896xf32>
    %2 = arith.truncf %1 : vector<8x896xf32> to vector<8x896xbf16>
    %c0_3 = arith.constant 0 : index
    %c0_4 = arith.constant 0 : index
    %3 = vector.load %arg3[%c0_3, %c0_4] : memref<896x128xbf16, #tpu.memory_space<vmem>>, vector<896x128xbf16>
    %cst = arith.constant dense<0.000000e+00> : vector<8x128xf32>
    %4 = tpu.matmul %2, %3, %cst {dimension_numbers = #tpu.dot_dimension_numbers<[1], [0], [0], [1], [0, 0, 1, 1], [], []>} : vector<8x896xbf16>, vector<896x128xbf16>, vector<8x128xf32> -> vector<8x128xf32>
    %5 = vector.extract_strided_slice %0 {offsets = [0, 0], sizes = [1, 128], strides = [1, 1]} : vector<11x128xf32> to vector<1x128xf32>
    %6 = vector.broadcast %5 : vector<1x128xf32> to vector<8x128xf32>
    %7 = arith.addf %4, %6 : vector<8x128xf32>
    %cst_5 = arith.constant 0.000000e+00 : f32
    %8 = vector.broadcast %cst_5 : f32 to vector<8x128xf32>
    %9 = arith.maximumf %7, %8 : vector<8x128xf32>
    %10 = arith.truncf %9 : vector<8x128xf32> to vector<8x128xbf16>
    %c0_6 = arith.constant 0 : index
    %c0_7 = arith.constant 0 : index
    %c0_8 = arith.constant 0 : index
    %11 = vector.load %arg4[%c0_6, %c0_7, %c0_8] : memref<10x128x128xbf16, #tpu.memory_space<vmem>>, vector<1x128x128xbf16>
    %12 = vector.shape_cast %11 : vector<1x128x128xbf16> to vector<128x128xbf16>
    %cst_9 = arith.constant dense<0.000000e+00> : vector<8x128xf32>
    %13 = tpu.matmul %10, %12, %cst_9 {dimension_numbers = #tpu.dot_dimension_numbers<[1], [0], [0], [1], [0, 0, 1, 1], [], []>} : vector<8x128xbf16>, vector<128x128xbf16>, vector<8x128xf32> -> vector<8x128xf32>
    %14 = vector.extract_strided_slice %0 {offsets = [1, 0], sizes = [1, 128], strides = [1, 1]} : vector<11x128xf32> to vector<1x128xf32>
    %15 = vector.broadcast %14 : vector<1x128xf32> to vector<8x128xf32>
    %16 = arith.addf %13, %15 : vector<8x128xf32>
    %cst_10 = arith.constant 0.000000e+00 : f32
    %17 = vector.broadcast %cst_10 : f32 to vector<8x128xf32>
    %18 = arith.maximumf %16, %17 : vector<8x128xf32>
    %19 = arith.truncf %18 : vector<8x128xf32> to vector<8x128xbf16>
    %c1 = arith.constant 1 : index
    %c0_11 = arith.constant 0 : index
    %c0_12 = arith.constant 0 : index
    %20 = vector.load %arg4[%c1, %c0_11, %c0_12] : memref<10x128x128xbf16, #tpu.memory_space<vmem>>, vector<1x128x128xbf16>
    %21 = vector.shape_cast %20 : vector<1x128x128xbf16> to vector<128x128xbf16>
    %cst_13 = arith.constant dense<0.000000e+00> : vector<8x128xf32>
    %22 = tpu.matmul %19, %21, %cst_13 {dimension_numbers = #tpu.dot_dimension_numbers<[1], [0], [0], [1], [0, 0, 1, 1], [], []>} : vector<8x128xbf16>, vector<128x128xbf16>, vector<8x128xf32> -> vector<8x128xf32>
    %23 = vector.extract_strided_slice %0 {offsets = [2, 0], sizes = [1, 128], strides = [1, 1]} : vector<11x128xf32> to vector<1x128xf32>
    %24 = vector.broadcast %23 : vector<1x128xf32> to vector<8x128xf32>
    %25 = arith.addf %22, %24 : vector<8x128xf32>
    %cst_14 = arith.constant 0.000000e+00 : f32
    %26 = vector.broadcast %cst_14 : f32 to vector<8x128xf32>
    %27 = arith.maximumf %25, %26 : vector<8x128xf32>
    %28 = arith.truncf %27 : vector<8x128xf32> to vector<8x128xbf16>
    %c2 = arith.constant 2 : index
    %c0_15 = arith.constant 0 : index
    %c0_16 = arith.constant 0 : index
    %29 = vector.load %arg4[%c2, %c0_15, %c0_16] : memref<10x128x128xbf16, #tpu.memory_space<vmem>>, vector<1x128x128xbf16>
    %30 = vector.shape_cast %29 : vector<1x128x128xbf16> to vector<128x128xbf16>
    %cst_17 = arith.constant dense<0.000000e+00> : vector<8x128xf32>
    %31 = tpu.matmul %28, %30, %cst_17 {dimension_numbers = #tpu.dot_dimension_numbers<[1], [0], [0], [1], [0, 0, 1, 1], [], []>} : vector<8x128xbf16>, vector<128x128xbf16>, vector<8x128xf32> -> vector<8x128xf32>
    %32 = vector.extract_strided_slice %0 {offsets = [3, 0], sizes = [1, 128], strides = [1, 1]} : vector<11x128xf32> to vector<1x128xf32>
    %33 = vector.broadcast %32 : vector<1x128xf32> to vector<8x128xf32>
    %34 = arith.addf %31, %33 : vector<8x128xf32>
    %cst_18 = arith.constant 0.000000e+00 : f32
    %35 = vector.broadcast %cst_18 : f32 to vector<8x128xf32>
    %36 = arith.maximumf %34, %35 : vector<8x128xf32>
    %37 = arith.truncf %36 : vector<8x128xf32> to vector<8x128xbf16>
    %c3 = arith.constant 3 : index
    %c0_19 = arith.constant 0 : index
    %c0_20 = arith.constant 0 : index
    %38 = vector.load %arg4[%c3, %c0_19, %c0_20] : memref<10x128x128xbf16, #tpu.memory_space<vmem>>, vector<1x128x128xbf16>
    %39 = vector.shape_cast %38 : vector<1x128x128xbf16> to vector<128x128xbf16>
    %cst_21 = arith.constant dense<0.000000e+00> : vector<8x128xf32>
    %40 = tpu.matmul %37, %39, %cst_21 {dimension_numbers = #tpu.dot_dimension_numbers<[1], [0], [0], [1], [0, 0, 1, 1], [], []>} : vector<8x128xbf16>, vector<128x128xbf16>, vector<8x128xf32> -> vector<8x128xf32>
    %41 = vector.extract_strided_slice %0 {offsets = [4, 0], sizes = [1, 128], strides = [1, 1]} : vector<11x128xf32> to vector<1x128xf32>
    %42 = vector.broadcast %41 : vector<1x128xf32> to vector<8x128xf32>
    %43 = arith.addf %40, %42 : vector<8x128xf32>
    %cst_22 = arith.constant 0.000000e+00 : f32
    %44 = vector.broadcast %cst_22 : f32 to vector<8x128xf32>
    %45 = arith.maximumf %43, %44 : vector<8x128xf32>
    %46 = arith.truncf %45 : vector<8x128xf32> to vector<8x128xbf16>
    %c4 = arith.constant 4 : index
    %c0_23 = arith.constant 0 : index
    %c0_24 = arith.constant 0 : index
    %47 = vector.load %arg4[%c4, %c0_23, %c0_24] : memref<10x128x128xbf16, #tpu.memory_space<vmem>>, vector<1x128x128xbf16>
    %48 = vector.shape_cast %47 : vector<1x128x128xbf16> to vector<128x128xbf16>
    %cst_25 = arith.constant dense<0.000000e+00> : vector<8x128xf32>
    %49 = tpu.matmul %46, %48, %cst_25 {dimension_numbers = #tpu.dot_dimension_numbers<[1], [0], [0], [1], [0, 0, 1, 1], [], []>} : vector<8x128xbf16>, vector<128x128xbf16>, vector<8x128xf32> -> vector<8x128xf32>
    %50 = vector.extract_strided_slice %0 {offsets = [5, 0], sizes = [1, 128], strides = [1, 1]} : vector<11x128xf32> to vector<1x128xf32>
    %51 = vector.broadcast %50 : vector<1x128xf32> to vector<8x128xf32>
    %52 = arith.addf %49, %51 : vector<8x128xf32>
    %c0_26 = arith.constant 0 : index
    %c0_27 = arith.constant 0 : index
    %53 = vector.load %arg8[%c0_26, %c0_27] : memref<8x128xf32, #tpu.memory_space<vmem>>, vector<8x128xf32>
    tpu.vector_store %arg8[%c0_26, %c0_27], %52 {strides = array<i32>} : memref<8x128xf32, #tpu.memory_space<vmem>>, vector<8x128xf32>,
    %cst_28 = arith.constant 5.000000e-01 : f32
    %54 = vector.broadcast %cst_28 : f32 to vector<8x128xf32>
    %55 = arith.mulf %52, %54 : vector<8x128xf32>
    %56 = math.exp %55 : vector<8x128xf32>
    %c0_29 = arith.constant 0 : index
    %c0_30 = arith.constant 0 : index
    %57 = vector.load %arg2[%c0_29, %c0_30] : memref<8x128xf32, #tpu.memory_space<vmem>>, vector<8x128xf32>
    %58 = arith.mulf %56, %57 : vector<8x128xf32>
    %59 = arith.addf %52, %58 : vector<8x128xf32>
    %c0_31 = arith.constant 0 : index
    %c0_32 = arith.constant 0 : index
    %60 = vector.load %arg9[%c0_31, %c0_32] : memref<8x128xf32, #tpu.memory_space<vmem>>, vector<8x128xf32>
    tpu.vector_store %arg9[%c0_31, %c0_32], %59 {strides = array<i32>} : memref<8x128xf32, #tpu.memory_space<vmem>>, vector<8x128xf32>,
    %61 = arith.truncf %59 : vector<8x128xf32> to vector<8x128xbf16>
    %c5 = arith.constant 5 : index
    %c0_33 = arith.constant 0 : index
    %c0_34 = arith.constant 0 : index
    %62 = vector.load %arg4[%c5, %c0_33, %c0_34] : memref<10x128x128xbf16, #tpu.memory_space<vmem>>, vector<1x128x128xbf16>
    %63 = vector.shape_cast %62 : vector<1x128x128xbf16> to vector<128x128xbf16>
    %cst_35 = arith.constant dense<0.000000e+00> : vector<8x128xf32>
    %64 = tpu.matmul %61, %63, %cst_35 {dimension_numbers = #tpu.dot_dimension_numbers<[1], [0], [0], [1], [0, 0, 1, 1], [], []>} : vector<8x128xbf16>, vector<128x128xbf16>, vector<8x128xf32> -> vector<8x128xf32>
    %65 = vector.extract_strided_slice %0 {offsets = [6, 0], sizes = [1, 128], strides = [1, 1]} : vector<11x128xf32> to vector<1x128xf32>
    %66 = vector.broadcast %65 : vector<1x128xf32> to vector<8x128xf32>
    %67 = arith.addf %64, %66 : vector<8x128xf32>
    %cst_36 = arith.constant 0.000000e+00 : f32
    %68 = vector.broadcast %cst_36 : f32 to vector<8x128xf32>
    %69 = arith.maximumf %67, %68 : vector<8x128xf32>
    %70 = arith.truncf %69 : vector<8x128xf32> to vector<8x128xbf16>
    %c6 = arith.constant 6 : index
    %c0_37 = arith.constant 0 : index
    %c0_38 = arith.constant 0 : index
    %71 = vector.load %arg4[%c6, %c0_37, %c0_38] : memref<10x128x128xbf16, #tpu.memory_space<vmem>>, vector<1x128x128xbf16>
    %72 = vector.shape_cast %71 : vector<1x128x128xbf16> to vector<128x128xbf16>
    %cst_39 = arith.constant dense<0.000000e+00> : vector<8x128xf32>
    %73 = tpu.matmul %70, %72, %cst_39 {dimension_numbers = #tpu.dot_dimension_numbers<[1], [0], [0], [1], [0, 0, 1, 1], [], []>} : vector<8x128xbf16>, vector<128x128xbf16>, vector<8x128xf32> -> vector<8x128xf32>
    %74 = vector.extract_strided_slice %0 {offsets = [7, 0], sizes = [1, 128], strides = [1, 1]} : vector<11x128xf32> to vector<1x128xf32>
    %75 = vector.broadcast %74 : vector<1x128xf32> to vector<8x128xf32>
    %76 = arith.addf %73, %75 : vector<8x128xf32>
    %cst_40 = arith.constant 0.000000e+00 : f32
    %77 = vector.broadcast %cst_40 : f32 to vector<8x128xf32>
    %78 = arith.maximumf %76, %77 : vector<8x128xf32>
    %79 = arith.truncf %78 : vector<8x128xf32> to vector<8x128xbf16>
    %c7 = arith.constant 7 : index
    %c0_41 = arith.constant 0 : index
    %c0_42 = arith.constant 0 : index
    %80 = vector.load %arg4[%c7, %c0_41, %c0_42] : memref<10x128x128xbf16, #tpu.memory_space<vmem>>, vector<1x128x128xbf16>
    %81 = vector.shape_cast %80 : vector<1x128x128xbf16> to vector<128x128xbf16>
    %cst_43 = arith.constant dense<0.000000e+00> : vector<8x128xf32>
    %82 = tpu.matmul %79, %81, %cst_43 {dimension_numbers = #tpu.dot_dimension_numbers<[1], [0], [0], [1], [0, 0, 1, 1], [], []>} : vector<8x128xbf16>, vector<128x128xbf16>, vector<8x128xf32> -> vector<8x128xf32>
    %83 = vector.extract_strided_slice %0 {offsets = [8, 0], sizes = [1, 128], strides = [1, 1]} : vector<11x128xf32> to vector<1x128xf32>
    %84 = vector.broadcast %83 : vector<1x128xf32> to vector<8x128xf32>
    %85 = arith.addf %82, %84 : vector<8x128xf32>
    %cst_44 = arith.constant 0.000000e+00 : f32
    %86 = vector.broadcast %cst_44 : f32 to vector<8x128xf32>
    %87 = arith.maximumf %85, %86 : vector<8x128xf32>
    %88 = arith.truncf %87 : vector<8x128xf32> to vector<8x128xbf16>
    %c8 = arith.constant 8 : index
    %c0_45 = arith.constant 0 : index
    %c0_46 = arith.constant 0 : index
    %89 = vector.load %arg4[%c8, %c0_45, %c0_46] : memref<10x128x128xbf16, #tpu.memory_space<vmem>>, vector<1x128x128xbf16>
    %90 = vector.shape_cast %89 : vector<1x128x128xbf16> to vector<128x128xbf16>
    %cst_47 = arith.constant dense<0.000000e+00> : vector<8x128xf32>
    %91 = tpu.matmul %88, %90, %cst_47 {dimension_numbers = #tpu.dot_dimension_numbers<[1], [0], [0], [1], [0, 0, 1, 1], [], []>} : vector<8x128xbf16>, vector<128x128xbf16>, vector<8x128xf32> -> vector<8x128xf32>
    %92 = vector.extract_strided_slice %0 {offsets = [9, 0], sizes = [1, 128], strides = [1, 1]} : vector<11x128xf32> to vector<1x128xf32>
    %93 = vector.broadcast %92 : vector<1x128xf32> to vector<8x128xf32>
    %94 = arith.addf %91, %93 : vector<8x128xf32>
    %cst_48 = arith.constant 0.000000e+00 : f32
    %95 = vector.broadcast %cst_48 : f32 to vector<8x128xf32>
    %96 = arith.maximumf %94, %95 : vector<8x128xf32>
    %97 = arith.truncf %96 : vector<8x128xf32> to vector<8x128xbf16>
    %c9 = arith.constant 9 : index
    %c0_49 = arith.constant 0 : index
    %c0_50 = arith.constant 0 : index
    %98 = vector.load %arg4[%c9, %c0_49, %c0_50] : memref<10x128x128xbf16, #tpu.memory_space<vmem>>, vector<1x128x128xbf16>
    %99 = vector.shape_cast %98 : vector<1x128x128xbf16> to vector<128x128xbf16>
    %cst_51 = arith.constant dense<0.000000e+00> : vector<8x128xf32>
    %100 = tpu.matmul %97, %99, %cst_51 {dimension_numbers = #tpu.dot_dimension_numbers<[1], [0], [0], [1], [0, 0, 1, 1], [], []>} : vector<8x128xbf16>, vector<128x128xbf16>, vector<8x128xf32> -> vector<8x128xf32>
    %101 = vector.extract_strided_slice %0 {offsets = [10, 0], sizes = [1, 128], strides = [1, 1]} : vector<11x128xf32> to vector<1x128xf32>
    %102 = vector.broadcast %101 : vector<1x128xf32> to vector<8x128xf32>
    %103 = arith.addf %100, %102 : vector<8x128xf32>
    %cst_52 = arith.constant 0.000000e+00 : f32
    %104 = vector.broadcast %cst_52 : f32 to vector<8x128xf32>
    %105 = arith.maximumf %103, %104 : vector<8x128xf32>
    %106 = arith.truncf %105 : vector<8x128xf32> to vector<8x128xbf16>
    %c0_53 = arith.constant 0 : index
    %c0_54 = arith.constant 0 : index
    %107 = vector.load %arg5[%c0_53, %c0_54] : memref<128x896xbf16, #tpu.memory_space<vmem>>, vector<128x896xbf16>
    %cst_55 = arith.constant dense<0.000000e+00> : vector<8x896xf32>
    %108 = tpu.matmul %106, %107, %cst_55 {dimension_numbers = #tpu.dot_dimension_numbers<[1], [0], [0], [1], [0, 0, 1, 1], [], []>} : vector<8x128xbf16>, vector<128x896xbf16>, vector<8x896xf32> -> vector<8x896xf32>
    %c0_56 = arith.constant 0 : index
    %c0_57 = arith.constant 0 : index
    %109 = vector.load %arg7[%c0_56, %c0_57] : memref<1x896xf32, #tpu.memory_space<vmem>>, vector<1x896xf32>
    %110 = vector.broadcast %109 : vector<1x896xf32> to vector<8x896xf32>
    %111 = arith.addf %108, %110 : vector<8x896xf32>
    %112 = arith.negf %111 : vector<8x896xf32>
    %113 = math.exp %112 : vector<8x896xf32>
    %cst_58 = arith.constant 1.000000e+00 : f32
    %114 = vector.broadcast %cst_58 : f32 to vector<8x896xf32>
    %115 = arith.addf %114, %113 : vector<8x896xf32>
    %116 = arith.divf %114, %115 : vector<8x896xf32>
    %c0_59 = arith.constant 0 : index
    %c0_60 = arith.constant 0 : index
    %117 = vector.load %arg10[%c0_59, %c0_60] : memref<8x896xf32, #tpu.memory_space<vmem>>, vector<8x896xf32>
    tpu.vector_store %arg10[%c0_59, %c0_60], %116 {strides = array<i32>} : memref<8x896xf32, #tpu.memory_space<vmem>>, vector<8x896xf32>,
    return
  }
  func.func @transform_0(%arg0: i32) -> (i32, i32) {
    %c0_i32 = arith.constant 0 : i32
    %c0_i32_0 = arith.constant 0 : i32
    return %arg0, %c0_i32 : i32, i32
  }
  func.func @transform_1(%arg0: i32) -> (i32, i32) {
    %c0_i32 = arith.constant 0 : i32
    %c0_i32_0 = arith.constant 0 : i32
    return %arg0, %c0_i32 : i32, i32
  }
  func.func @transform_2(%arg0: i32) -> (i32, i32) {
    %c0_i32 = arith.constant 0 : i32
    %c0_i32_0 = arith.constant 0 : i32
    %c0_i32_1 = arith.constant 0 : i32
    return %c0_i32, %c0_i32_0 : i32, i32
  }
  func.func @transform_3(%arg0: i32) -> (i32, i32, i32) {
    %c0_i32 = arith.constant 0 : i32
    %c0_i32_0 = arith.constant 0 : i32
    %c0_i32_1 = arith.constant 0 : i32
    %c0_i32_2 = arith.constant 0 : i32
    return %c0_i32, %c0_i32_0, %c0_i32_1 : i32, i32, i32
  }
  func.func @transform_4(%arg0: i32) -> (i32, i32) {
    %c0_i32 = arith.constant 0 : i32
    %c0_i32_0 = arith.constant 0 : i32
    %c0_i32_1 = arith.constant 0 : i32
    return %c0_i32, %c0_i32_0 : i32, i32
  }
  func.func @transform_5(%arg0: i32) -> (i32, i32) {
    %c0_i32 = arith.constant 0 : i32
    %c0_i32_0 = arith.constant 0 : i32
    %c0_i32_1 = arith.constant 0 : i32
    return %c0_i32, %c0_i32_0 : i32, i32
  }
  func.func @transform_6(%arg0: i32) -> (i32, i32) {
    %c0_i32 = arith.constant 0 : i32
    %c0_i32_0 = arith.constant 0 : i32
    %c0_i32_1 = arith.constant 0 : i32
    return %c0_i32, %c0_i32_0 : i32, i32
  }
  func.func @transform_7(%arg0: i32) -> (i32, i32) {
    %c0_i32 = arith.constant 0 : i32
    %c0_i32_0 = arith.constant 0 : i32
    return %arg0, %c0_i32 : i32, i32
  }
  func.func @transform_8(%arg0: i32) -> (i32, i32) {
    %c0_i32 = arith.constant 0 : i32
    %c0_i32_0 = arith.constant 0 : i32
    return %arg0, %c0_i32 : i32, i32
  }
  func.func @transform_9(%arg0: i32) -> (i32, i32) {
    %c0_i32 = arith.constant 0 : i32
    %c0_i32_0 = arith.constant 0 : i32
    return %arg0, %c0_i32 : i32, i32
  }
}

</mosaic_0001>

<llo_original>
// kernel: vae_forward.1
$region0: #{vae_forward.1}
  #allocation0 [shape = 'u32[]', space=smem, size = 0x4, offset = 0x4, fixed_abs, tag = 'smem constant byte address 0x4 - core index']
  #allocation1 [shape = 'u32[144,128]{1,0:T(1,128)}', space=vmem, size = 0x12000, scoped, tag = 'internal scratch']
  %s0 = inlined_call_operand.vmem [shape: f32[16,896], index: 0, kind: input, shape index: {}]
  %s1 = inlined_call_operand.vmem [shape: f32[16,128], index: 1, kind: input, shape index: {}]
  %s2 = inlined_call_operand.hbm [shape: bf16[896,128], index: 2, kind: input, shape index: {}]
  %s3 = inlined_call_operand.hbm [shape: bf16[10,128,128], index: 3, kind: input, shape index: {}]
  %s4 = inlined_call_operand.hbm [shape: bf16[128,896], index: 4, kind: input, shape index: {}]
  %s5 = inlined_call_operand.vmem [shape: f32[11,128], index: 5, kind: input, shape index: {}]
  %s6 = inlined_call_operand.vmem [shape: f32[1,896], index: 6, kind: input, shape index: {}]
  %s7 = inlined_call_operand.vmem [shape: f32[16,128], index: 7, kind: output, shape index: {0}]
  %s8 = inlined_call_operand.vmem [shape: f32[16,128], index: 8, kind: output, shape index: {1}]
  %s9 = inlined_call_operand.hbm [shape: f32[16,896], index: 9, kind: output, shape index: {2}]
  %10 = xla_tuple %s7, %s8, %s9
  %s11 = sld [smem:[#allocation0]]
  $region89: #{vae_forward.1} parent=0
    _
  %s13 = ssub.s32 1, %s11
  %s14 = scalar_select 0, %s13, %s11
  $region1: #{vae_forward.1} parent=0
    #allocation2 [shape = 'u8[229376]{0}', space=vmem, size = 0x38000, scoped, tag = 'input window, operand 2, single buffered']
    #allocation3 [shape = 's32[2]{0}', space=sflag, size = 0x8, scoped, tag = 'scoped memory for vae_forward.1']
    #allocation4 [shape = 's32[2]{0}', space=sflag, size = 0x8, scoped, tag = 'scoped memory for vae_forward.1']
    #allocation5 [shape = 'u8[327680]{0}', space=vmem, size = 0x50000, scoped, tag = 'input window, operand 3, single buffered']
    #allocation6 [shape = 's32[1]{0}', space=sflag, size = 0x4, scoped, tag = 'scoped memory for vae_forward.1']
    #allocation7 [shape = 'u8[229376]{0}', space=vmem, size = 0x38000, scoped, tag = 'input window, operand 4, single buffered']
    #allocation8 [shape = 'u8[57344]{0}', space=vmem, size = 0xe000, scoped, tag = 'output window, operand 2']
    %15 = vsyncpa [#allocation3], 0
    %16 = vsyncpa [#allocation6], 0
    %17 = vsyncpa [#allocation4], 0
    %s18 = scalar_lea.sflag [#allocation4], 1
    %19 = vsyncpa %s18, 0
    loop: start=0, step=1, limit=4
    $region2: #{vae_forward.1} parent=1 // loop_pre_header
      _
    $region3: #{vae_forward.1} parent=1 // loop_header
      %s21 = sphi 0, %s25
      %p22 = scmp.ge.s32.totalorder %s21, 4
      %s31 = sphi 0, %s33
      %s34 = sphi 0, %s31
      %s35 = sphi 0, %s34
      %s51 = sphi 0, %s35
      %s57 = sphi 0, %s59
      %s60 = sphi 0, %s57
      %s61 = sphi 0, %s60
      %s77 = sphi 0, %s61
      %s81 = sphi 0, %s81
      %s83 = sphi 0, %s81
      %s84 = sphi 0, %s83
      %s98 = sphi 0, %s84
      %s102 = sphi 0, %s102
      %s104 = sphi 0, %s102
      %s105 = sphi 0, %s104
      %s119 = sphi 0, %s105
      %s123 = sphi 0, %s123
      %s125 = sphi 0, %s123
      %s126 = sphi 0, %s125
      %s140 = sphi 0, %s126
      %s144 = sphi 0, %s144
      %s146 = sphi 0, %s144
      %s147 = sphi 0, %s146
      %s161 = sphi 0, %s147
      %s165 = sphi 0, %s165
      %s167 = sphi 0, %s165
      %s168 = sphi 0, %s167
      %s182 = sphi 0, %s168
      %s188 = sphi 0, %s190
      %s191 = sphi 0, %s188
      %s192 = sphi 0, %s191
      %s208 = sphi 0, %s192
      %s214 = sphi 0, %s216
      %s217 = sphi 0, %s214
      %s218 = sphi 0, %s217
      %s234 = sphi 0, %s218
      %s240 = sphi 0, %s242
      %s243 = sphi 0, %s240
      %s244 = sphi 0, %s243
      %s260 = sphi 0, %s244
    $region4: #{vae_forward.1} parent=1 // loop_header_branch
      %24 = sbr.rel (%p22) target = $region8
    $region5: #{vae_forward.1} parent=1 // loop_body
      %s26 = ssub.s32 %s21, 1
      %s27 = ssub.s32 %s21, 2
      %s28 = sadd.s32 %s21, 1
      %s29 = ssub.s32 %s21, %s28
      %p30 = scmp.eq.s32.totalorder %s29, 0
      %s32 = sadd.s32 %s31, 1
      %s33 = scalar_select %p30, %s31, %s32
      %p36 = pneg %p30
      %p37 = scmp.eq.s32.totalorder %s21, 1
      %p38 = por %p36, %p37
      %p39 = scmp.ne.s32.totalorder %s31, %s34
      %p40 = scmp.eq.s32.totalorder %s21, 0
      %p41 = por %p39, %p40
      %p42 = scmp.ne.s32.totalorder %s31, %s34
      %p43 = scmp.eq.s32.totalorder %s26, 1
      %p44 = por %p42, %p43
      %p45 = scmp.ne.s32.totalorder %s34, %s35
      %p46 = scmp.eq.s32.totalorder %s26, 0
      %p47 = por %p45, %p46
      %p48 = scmp.ne.s32.totalorder %s34, %s35
      %p49 = scmp.eq.s32.totalorder %s27, 1
      %p50 = por %p48, %p49
      %p52 = scmp.ne.s32.totalorder %s35, %s51
      %p53 = scmp.eq.s32.totalorder %s27, 0
      %p54 = por %p52, %p53
      %s55 = ssub.s32 %s21, %s28
      %p56 = scmp.eq.s32.totalorder %s55, 0
      %s58 = sadd.s32 %s57, 1
      %s59 = scalar_select %p56, %s57, %s58
      %p62 = pneg %p56
      %p63 = scmp.eq.s32.totalorder %s21, 1
      %p64 = por %p62, %p63
      %p65 = scmp.ne.s32.totalorder %s57, %s60
      %p66 = scmp.eq.s32.totalorder %s21, 0
      %p67 = por %p65, %p66
      %p68 = scmp.ne.s32.totalorder %s57, %s60
      %p69 = scmp.eq.s32.totalorder %s26, 1
      %p70 = por %p68, %p69
      %p71 = scmp.ne.s32.totalorder %s60, %s61
      %p72 = scmp.eq.s32.totalorder %s26, 0
      %p73 = por %p71, %p72
      %p74 = scmp.ne.s32.totalorder %s60, %s61
      %p75 = scmp.eq.s32.totalorder %s27, 1
      %p76 = por %p74, %p75
      %p78 = scmp.ne.s32.totalorder %s61, %s77
      %p79 = scmp.eq.s32.totalorder %s27, 0
      %p80 = por %p78, %p79
      %s82 = sadd.s32 %s81, 1
      %p85 = scmp.eq.s32.totalorder %s21, 1
      %p86 = scmp.ne.s32.totalorder %s81, %s83
      %p87 = scmp.eq.s32.totalorder %s21, 0
      %p88 = por %p86, %p87
      %p89 = scmp.ne.s32.totalorder %s81, %s83
      %p90 = scmp.eq.s32.totalorder %s26, 1
      %p91 = por %p89, %p90
      %p92 = scmp.ne.s32.totalorder %s83, %s84
      %p93 = scmp.eq.s32.totalorder %s26, 0
      %p94 = por %p92, %p93
      %p95 = scmp.ne.s32.totalorder %s83, %s84
      %p96 = scmp.eq.s32.totalorder %s27, 1
      %p97 = por %p95, %p96
      %p99 = scmp.ne.s32.totalorder %s84, %s98
      %p100 = scmp.eq.s32.totalorder %s27, 0
      %p101 = por %p99, %p100
      %s103 = sadd.s32 %s102, 1
      %p106 = scmp.eq.s32.totalorder %s21, 1
      %p107 = scmp.ne.s32.totalorder %s102, %s104
      %p108 = scmp.eq.s32.totalorder %s21, 0
      %p109 = por %p107, %p108
      %p110 = scmp.ne.s32.totalorder %s102, %s104
      %p111 = scmp.eq.s32.totalorder %s26, 1
      %p112 = por %p110, %p111
      %p113 = scmp.ne.s32.totalorder %s104, %s105
      %p114 = scmp.eq.s32.totalorder %s26, 0
      %p115 = por %p113, %p114
      %p116 = scmp.ne.s32.totalorder %s104, %s105
      %p117 = scmp.eq.s32.totalorder %s27, 1
      %p118 = por %p116, %p117
      %p120 = scmp.ne.s32.totalorder %s105, %s119
      %p121 = scmp.eq.s32.totalorder %s27, 0
      %p122 = por %p120, %p121
      %s124 = sadd.s32 %s123, 1
      %p127 = scmp.eq.s32.totalorder %s21, 1
      %p128 = scmp.ne.s32.totalorder %s123, %s125
      %p129 = scmp.eq.s32.totalorder %s21, 0
      %p130 = por %p128, %p129
      %p131 = scmp.ne.s32.totalorder %s123, %s125
      %p132 = scmp.eq.s32.totalorder %s26, 1
      %p133 = por %p131, %p132
      %p134 = scmp.ne.s32.totalorder %s125, %s126
      %p135 = scmp.eq.s32.totalorder %s26, 0
      %p136 = por %p134, %p135
      %p137 = scmp.ne.s32.totalorder %s125, %s126
      %p138 = scmp.eq.s32.totalorder %s27, 1
      %p139 = por %p137, %p138
      %p141 = scmp.ne.s32.totalorder %s126, %s140
      %p142 = scmp.eq.s32.totalorder %s27, 0
      %p143 = por %p141, %p142
      %s145 = sadd.s32 %s144, 1
      %p148 = scmp.eq.s32.totalorder %s21, 1
      %p149 = scmp.ne.s32.totalorder %s144, %s146
      %p150 = scmp.eq.s32.totalorder %s21, 0
      %p151 = por %p149, %p150
      %p152 = scmp.ne.s32.totalorder %s144, %s146
      %p153 = scmp.eq.s32.totalorder %s26, 1
      %p154 = por %p152, %p153
      %p155 = scmp.ne.s32.totalorder %s146, %s147
      %p156 = scmp.eq.s32.totalorder %s26, 0
      %p157 = por %p155, %p156
      %p158 = scmp.ne.s32.totalorder %s146, %s147
      %p159 = scmp.eq.s32.totalorder %s27, 1
      %p160 = por %p158, %p159
      %p162 = scmp.ne.s32.totalorder %s147, %s161
      %p163 = scmp.eq.s32.totalorder %s27, 0
      %p164 = por %p162, %p163
      %s166 = sadd.s32 %s165, 1
      %p169 = scmp.eq.s32.totalorder %s21, 1
      %p170 = scmp.ne.s32.totalorder %s165, %s167
      %p171 = scmp.eq.s32.totalorder %s21, 0
      %p172 = por %p170, %p171
      %p173 = scmp.ne.s32.totalorder %s165, %s167
      %p174 = scmp.eq.s32.totalorder %s26, 1
      %p175 = por %p173, %p174
      %p176 = scmp.ne.s32.totalorder %s167, %s168
      %p177 = scmp.eq.s32.totalorder %s26, 0
      %p178 = por %p176, %p177
      %p179 = scmp.ne.s32.totalorder %s167, %s168
      %p180 = scmp.eq.s32.totalorder %s27, 1
      %p181 = por %p179, %p180
      %p183 = scmp.ne.s32.totalorder %s168, %s182
      %p184 = scmp.eq.s32.totalorder %s27, 0
      %p185 = por %p183, %p184
      %s186 = ssub.s32 %s21, %s28
      %p187 = scmp.eq.s32.totalorder %s186, 0
      %s189 = sadd.s32 %s188, 1
      %s190 = scalar_select %p187, %s188, %s189
      %p193 = pneg %p187
      %p194 = scmp.eq.s32.totalorder %s21, 1
      %p195 = por %p193, %p194
      %p196 = scmp.ne.s32.totalorder %s188, %s191
      %p197 = scmp.eq.s32.totalorder %s21, 0
      %p198 = por %p196, %p197
      %p199 = scmp.ne.s32.totalorder %s188, %s191
      %p200 = scmp.eq.s32.totalorder %s26, 1
      %p201 = por %p199, %p200
      %p202 = scmp.ne.s32.totalorder %s191, %s192
      %p203 = scmp.eq.s32.totalorder %s26, 0
      %p204 = por %p202, %p203
      %p205 = scmp.ne.s32.totalorder %s191, %s192
      %p206 = scmp.eq.s32.totalorder %s27, 1
      %p207 = por %p205, %p206
      %p209 = scmp.ne.s32.totalorder %s192, %s208
      %p210 = scmp.eq.s32.totalorder %s27, 0
      %p211 = por %p209, %p210
      %s212 = ssub.s32 %s21, %s28
      %p213 = scmp.eq.s32.totalorder %s212, 0
      %s215 = sadd.s32 %s214, 1
      %s216 = scalar_select %p213, %s214, %s215
      %p219 = pneg %p213
      %p220 = scmp.eq.s32.totalorder %s21, 1
      %p221 = por %p219, %p220
      %p222 = scmp.ne.s32.totalorder %s214, %s217
      %p223 = scmp.eq.s32.totalorder %s21, 0
      %p224 = por %p222, %p223
      %p225 = scmp.ne.s32.totalorder %s214, %s217
      %p226 = scmp.eq.s32.totalorder %s26, 1
      %p227 = por %p225, %p226
      %p228 = scmp.ne.s32.totalorder %s217, %s218
      %p229 = scmp.eq.s32.totalorder %s26, 0
      %p230 = por %p228, %p229
      %p231 = scmp.ne.s32.totalorder %s217, %s218
      %p232 = scmp.eq.s32.totalorder %s27, 1
      %p233 = por %p231, %p232
      %p235 = scmp.ne.s32.totalorder %s218, %s234
      %p236 = scmp.eq.s32.totalorder %s27, 0
      %p237 = por %p235, %p236
      %s238 = ssub.s32 %s21, %s28
      %p239 = scmp.eq.s32.totalorder %s238, 0
      %s241 = sadd.s32 %s240, 1
      %s242 = scalar_select %p239, %s240, %s241
      %p245 = pneg %p239
      %p246 = scmp.eq.s32.totalorder %s21, 1
      %p247 = por %p245, %p246
      %p248 = scmp.ne.s32.totalorder %s240, %s243
      %p249 = scmp.eq.s32.totalorder %s21, 0
      %p250 = por %p248, %p249
      %p251 = scmp.ne.s32.totalorder %s240, %s243
      %p252 = scmp.eq.s32.totalorder %s26, 1
      %p253 = por %p251, %p252
      %p254 = scmp.ne.s32.totalorder %s243, %s244
      %p255 = scmp.eq.s32.totalorder %s26, 0
      %p256 = por %p254, %p255
      %p257 = scmp.ne.s32.totalorder %s243, %s244
      %p258 = scmp.eq.s32.totalorder %s27, 1
      %p259 = por %p257, %p258
      %p261 = scmp.ne.s32.totalorder %s244, %s260
      %p262 = scmp.eq.s32.totalorder %s27, 0
      %p263 = por %p261, %p262
      %p264 = scmp.le.s32.totalorder 1, %s21
      %p265 = scmp.lt.s32.totalorder %s21, 3
      %p266 = pnand %p264, %p265
      %p267 = pneg %p266
      // Predicated region
      $region9: #{vae_forward.1} parent=5 // pred_check
        _
      $region10: #{vae_forward.1} parent=5 // pred_check_branch
        %269 = sbr.rel (%p266) target = $region12
      $region11: #{vae_forward.1} parent=5 // pred_region
        %s270 = ssub.s32 %s21, 1
        // Predicated region
        $region13: #{vae_forward.1} parent=11 // pred_check
          %p271 = pneg %p94
        $region14: #{vae_forward.1} parent=11 // pred_check_branch
          %273 = sbr.rel (%p271) target = $region16
        $region15: #{vae_forward.1} parent=11 // pred_region
          %s275 = ssub.s32 7168, 7168
          %276 = vsyncadd [#allocation3], %s275
          %s277 = sshll.u32 [#allocation2], 4
          %s278 = int_to_ptr.vmem [resolvable:$true] %s277
          %283 = dma.hbm_to_vmem [thread:$0]  %s2, 7168, %s278, [#allocation3], 64, 64, 4
        $region16: #{vae_forward.1} parent=11 // pred_fallthru
          _
        // Predicated region
        $region17: #{vae_forward.1} parent=11 // pred_check
          %p284 = pneg %p115
        $region18: #{vae_forward.1} parent=11 // pred_check_branch
          %286 = sbr.rel (%p284) target = $region20
        $region19: #{vae_forward.1} parent=11 // pred_region
          %s288 = ssub.s32 10240, 10240
          %289 = vsyncadd [#allocation6], %s288
          %s290 = sshll.u32 [#allocation5], 4
          %s291 = int_to_ptr.vmem [resolvable:$true] %s290
          %296 = dma.hbm_to_vmem [thread:$0]  %s3, 10240, %s291, [#allocation6], 64, 64, 4
        $region20: #{vae_forward.1} parent=11 // pred_fallthru
          _
        // Predicated region
        $region21: #{vae_forward.1} parent=11 // pred_check
          %p297 = pneg %p136
        $region22: #{vae_forward.1} parent=11 // pred_check_branch
          %299 = sbr.rel (%p297) target = $region24
        $region23: #{vae_forward.1} parent=11 // pred_region
          %s301 = ssub.s32 7168, 7168
          %302 = vsyncadd [#allocation6], %s301
          %s303 = sshll.u32 [#allocation7], 4
          %s304 = int_to_ptr.vmem [resolvable:$true] %s303
          %309 = dma.hbm_to_vmem [thread:$0]  %s4, 7168, %s304, [#allocation6], 448, 448, 28
        $region24: #{vae_forward.1} parent=11 // pred_fallthru
          _
        // Predicated region
        $region25: #{vae_forward.1} parent=11 // pred_check
          %p310 = pneg %p157
        $region26: #{vae_forward.1} parent=11 // pred_check_branch
          %312 = sbr.rel (%p310) target = $region28
        $region27: #{vae_forward.1} parent=11 // pred_region
          _
        $region28: #{vae_forward.1} parent=11 // pred_fallthru
          _
        // Predicated region
        $region29: #{vae_forward.1} parent=11 // pred_check
          %p313 = pneg %p178
        $region30: #{vae_forward.1} parent=11 // pred_check_branch
          %315 = sbr.rel (%p313) target = $region32
        $region31: #{vae_forward.1} parent=11 // pred_region
          _
        $region32: #{vae_forward.1} parent=11 // pred_fallthru
          _
      $region12: #{vae_forward.1} parent=5 // pred_fallthru
        _
      %p316 = scmp.lt.s32.totalorder %s21, 2
      // Predicated region
      $region33: #{vae_forward.1} parent=5 // pred_check
        %p317 = pneg %p316
      $region34: #{vae_forward.1} parent=5 // pred_check_branch
        %319 = sbr.rel (%p317) target = $region36
      $region35: #{vae_forward.1} parent=5 // pred_region
        // Predicated region
        $region37: #{vae_forward.1} parent=35 // pred_check
          %p320 = pneg %p41
        $region38: #{vae_forward.1} parent=35 // pred_check_branch
          %322 = sbr.rel (%p320) target = $region40
        $region39: #{vae_forward.1} parent=35 // pred_region
          %p323 = scmp.lt.s32.totalorder %s21, 1
          %s324 = scalar_select %p323, %s21, 1
          %s325 = smul.addr %s324, 7
          %s326 = smul.addr %s325, 8
          %s327 = scalar_lea.vmem %s0, %s326
        $region40: #{vae_forward.1} parent=35 // pred_fallthru
          _
        // Predicated region
        $region41: #{vae_forward.1} parent=35 // pred_check
          %p328 = pneg %p67
        $region42: #{vae_forward.1} parent=35 // pred_check_branch
          %330 = sbr.rel (%p328) target = $region44
        $region43: #{vae_forward.1} parent=35 // pred_region
          %p331 = scmp.lt.s32.totalorder %s21, 1
          %s332 = scalar_select %p331, %s21, 1
          %s333 = smul.addr %s332, 8
          %s334 = scalar_lea.vmem %s1, %s333
        $region44: #{vae_forward.1} parent=35 // pred_fallthru
          _
      $region36: #{vae_forward.1} parent=5 // pred_fallthru
        _
      %p335 = scmp.le.s32.totalorder 1, %s21
      %p336 = scmp.lt.s32.totalorder %s21, 3
      %p337 = pnand %p335, %p336
      %p338 = pneg %p337
      // Predicated region
      $region45: #{vae_forward.1} parent=5 // pred_check
        _
      $region46: #{vae_forward.1} parent=5 // pred_check_branch
        %340 = sbr.rel (%p337) target = $region48
      $region47: #{vae_forward.1} parent=5 // pred_region
        %s341 = ssub.s32 %s21, 1
        // Predicated region
        $region49: #{vae_forward.1} parent=47 // pred_check
          %p342 = pneg %p94
        $region50: #{vae_forward.1} parent=47 // pred_check_branch
          %344 = sbr.rel (%p342) target = $region52
        $region51: #{vae_forward.1} parent=47 // pred_region
          %345 = dma.done [#allocation3], 7168
        $region52: #{vae_forward.1} parent=47 // pred_fallthru
          _
        // Predicated region
        $region53: #{vae_forward.1} parent=47 // pred_check
          %p346 = pneg %p115
        $region54: #{vae_forward.1} parent=47 // pred_check_branch
          %348 = sbr.rel (%p346) target = $region56
        $region55: #{vae_forward.1} parent=47 // pred_region
          %349 = dma.done [#allocation6], 10240
        $region56: #{vae_forward.1} parent=47 // pred_fallthru
          _
        // Predicated region
        $region57: #{vae_forward.1} parent=47 // pred_check
          %p350 = pneg %p136
        $region58: #{vae_forward.1} parent=47 // pred_check_branch
          %352 = sbr.rel (%p350) target = $region60
        $region59: #{vae_forward.1} parent=47 // pred_region
          %353 = dma.done [#allocation6], 7168
        $region60: #{vae_forward.1} parent=47 // pred_fallthru
          _
        %p354 = scmp.lt.s32.totalorder %s26, 1
        %s355 = scalar_select %p354, %s26, 1
        %s356 = smul.addr %s355, 7
        %s357 = smul.addr %s356, 8
        %s358 = scalar_lea.vmem %s0, %s357
        %p359 = pneg %p47
        %p360 = pneg %p44
        %p361 = scmp.lt.s32.totalorder %s26, 1
        %s362 = scalar_select %p361, %s26, 1
        %s363 = smul.addr %s362, 8
        %s364 = scalar_lea.vmem %s1, %s363
        %p365 = pneg %p73
        %p366 = pneg %p70
        %p367 = pneg %p94
        %p368 = pneg %p91
        %p369 = pneg %p115
        %p370 = pneg %p112
        %p371 = pneg %p136
        %p372 = pneg %p133
        %p373 = pneg %p157
        %p374 = pneg %p154
        %p375 = pneg %p178
        %p376 = pneg %p175
        %p377 = pneg %p204
        %p378 = pneg %p201
        %p379 = scmp.lt.s32.totalorder %s26, 1
        %s380 = scalar_select %p379, %s26, 1
        %s381 = smul.addr %s380, 8
        %s382 = scalar_lea.vmem %s7, %s381
        %p383 = pneg %p230
        %p384 = pneg %p227
        %p385 = scmp.lt.s32.totalorder %s26, 1
        %s386 = scalar_select %p385, %s26, 1
        %s387 = smul.addr %s386, 8
        %s388 = scalar_lea.vmem %s8, %s387
        %p389 = pneg %p256
        %p390 = pneg %p253
        %s391 = sand.u32 %s243, 1
        %s392 = scalar_lea.sflag [#allocation4], %s391
        %s393 = sand.u32 %s243, 1
        %s394 = smul.addr %s393, 56
        %s395 = scalar_lea.vmem [#allocation8], %s394
        %p396 = scmp.lt.s32.totalorder %s26, 1
        %s397 = scalar_select %p396, %s26, 1
        %s398 = smul.addr %s397, 7
        %s399 = smul.addr %s398, 8
        %s400 = scalar_lea.vmem %s0, %s399
        %p401 = scmp.lt.s32.totalorder %s26, 1
        %s402 = scalar_select %p401, %s26, 1
        %s403 = smul.addr %s402, 8
        %s404 = scalar_lea.vmem %s1, %s403
        %p405 = scmp.lt.s32.totalorder %s26, 1
        %s406 = scalar_select %p405, %s26, 1
        %s407 = smul.addr %s406, 8
        %s408 = scalar_lea.vmem %s7, %s407
        %p409 = scmp.lt.s32.totalorder %s26, 1
        %s410 = scalar_select %p409, %s26, 1
        %s411 = smul.addr %s410, 8
        %s412 = scalar_lea.vmem %s8, %s411
        %v414 = vld [vmem:[%s5] sm:$0xff]
        %v415 = vld [vmem:[%s5 + $0x8] sm:$0x7]
        %v416 = vld [vmem:[%s400] sm:$0xff]
        %v417 = vld [vmem:[%s400 + $0x8] sm:$0xff]
        %v418 = vld [vmem:[%s400 + $0x10] sm:$0xff]
        %v419 = vld [vmem:[%s400 + $0x18] sm:$0xff]
        %v420 = vld [vmem:[%s400 + $0x20] sm:$0xff]
        %v421 = vld [vmem:[%s400 + $0x28] sm:$0xff]
        %v422 = vld [vmem:[%s400 + $0x30] sm:$0xff]
        %v423 = vpack.c.bf16 %v416, %v416
        %v424 = vpack.c.bf16 %v417, %v417
        %v425 = vpack.c.bf16 %v418, %v418
        %v426 = vpack.c.bf16 %v419, %v419
        %v427 = vpack.c.bf16 %v420, %v420
        %v428 = vpack.c.bf16 %v421, %v421
        %v429 = vpack.c.bf16 %v422, %v422
        %v430 = vld [vmem:[#allocation2] sm:$0xf]
        %v431 = vld [vmem:[#allocation2 + $0x4] sm:$0xf]
        %v432 = vld [vmem:[#allocation2 + $0x8] sm:$0xf]
        %v433 = vld [vmem:[#allocation2 + $0xc] sm:$0xf]
        %v434 = vld [vmem:[#allocation2 + $0x10] sm:$0xf]
        %v435 = vld [vmem:[#allocation2 + $0x14] sm:$0xf]
        %v436 = vld [vmem:[#allocation2 + $0x18] sm:$0xf]
        %v437 = vld [vmem:[#allocation2 + $0x1c] sm:$0xf]
        %v438 = vld [vmem:[#allocation2 + $0x20] sm:$0xf]
        %v439 = vld [vmem:[#allocation2 + $0x24] sm:$0xf]
        %v440 = vld [vmem:[#allocation2 + $0x28] sm:$0xf]
        %v441 = vld [vmem:[#allocation2 + $0x2c] sm:$0xf]
        %v442 = vld [vmem:[#allocation2 + $0x30] sm:$0xf]
        %v443 = vld [vmem:[#allocation2 + $0x34] sm:$0xf]
        %v444 = vld [vmem:[#allocation2 + $0x38] sm:$0xf]
        %v445 = vld [vmem:[#allocation2 + $0x3c] sm:$0xf]
        %v446 = vld [vmem:[#allocation2 + $0x40] sm:$0xf]
        %v447 = vld [vmem:[#allocation2 + $0x44] sm:$0xf]
        %v448 = vld [vmem:[#allocation2 + $0x48] sm:$0xf]
        %v449 = vld [vmem:[#allocation2 + $0x4c] sm:$0xf]
        %v450 = vld [vmem:[#allocation2 + $0x50] sm:$0xf]
        %v451 = vld [vmem:[#allocation2 + $0x54] sm:$0xf]
        %v452 = vld [vmem:[#allocation2 + $0x58] sm:$0xf]
        %v453 = vld [vmem:[#allocation2 + $0x5c] sm:$0xf]
        %v454 = vld [vmem:[#allocation2 + $0x60] sm:$0xf]
        %v455 = vld [vmem:[#allocation2 + $0x64] sm:$0xf]
        %v456 = vld [vmem:[#allocation2 + $0x68] sm:$0xf]
        %v457 = vld [vmem:[#allocation2 + $0x6c] sm:$0xf]
        %v458 = vld [vmem:[#allocation2 + $0x70] sm:$0xf]
        %v459 = vld [vmem:[#allocation2 + $0x74] sm:$0xf]
        %v460 = vld [vmem:[#allocation2 + $0x78] sm:$0xf]
        %v461 = vld [vmem:[#allocation2 + $0x7c] sm:$0xf]
        %v462 = vld [vmem:[#allocation2 + $0x80] sm:$0xf]
        %v463 = vld [vmem:[#allocation2 + $0x84] sm:$0xf]
        %v464 = vld [vmem:[#allocation2 + $0x88] sm:$0xf]
        %v465 = vld [vmem:[#allocation2 + $0x8c] sm:$0xf]
        %v466 = vld [vmem:[#allocation2 + $0x90] sm:$0xf]
        %v467 = vld [vmem:[#allocation2 + $0x94] sm:$0xf]
        %v468 = vld [vmem:[#allocation2 + $0x98] sm:$0xf]
        %v469 = vld [vmem:[#allocation2 + $0x9c] sm:$0xf]
        %v470 = vld [vmem:[#allocation2 + $0xa0] sm:$0xf]
        %v471 = vld [vmem:[#allocation2 + $0xa4] sm:$0xf]
        %v472 = vld [vmem:[#allocation2 + $0xa8] sm:$0xf]
        %v473 = vld [vmem:[#allocation2 + $0xac] sm:$0xf]
        %v474 = vld [vmem:[#allocation2 + $0xb0] sm:$0xf]
        %v475 = vld [vmem:[#allocation2 + $0xb4] sm:$0xf]
        %v476 = vld [vmem:[#allocation2 + $0xb8] sm:$0xf]
        %v477 = vld [vmem:[#allocation2 + $0xbc] sm:$0xf]
        %v478 = vld [vmem:[#allocation2 + $0xc0] sm:$0xf]
        %v479 = vld [vmem:[#allocation2 + $0xc4] sm:$0xf]
        %v480 = vld [vmem:[#allocation2 + $0xc8] sm:$0xf]
        %v481 = vld [vmem:[#allocation2 + $0xcc] sm:$0xf]
        %v482 = vld [vmem:[#allocation2 + $0xd0] sm:$0xf]
        %v483 = vld [vmem:[#allocation2 + $0xd4] sm:$0xf]
        %v484 = vld [vmem:[#allocation2 + $0xd8] sm:$0xf]
        %v485 = vld [vmem:[#allocation2 + $0xdc] sm:$0xf]
        %v486 = vld [vmem:[#allocation2 + $0xe0] sm:$0xf]
        %v487 = vld [vmem:[#allocation2 + $0xe4] sm:$0xf]
        %v488 = vld [vmem:[#allocation2 + $0xe8] sm:$0xf]
        %v489 = vld [vmem:[#allocation2 + $0xec] sm:$0xf]
        %v490 = vld [vmem:[#allocation2 + $0xf0] sm:$0xf]
        %v491 = vld [vmem:[#allocation2 + $0xf4] sm:$0xf]
        %v492 = vld [vmem:[#allocation2 + $0xf8] sm:$0xf]
        %v493 = vld [vmem:[#allocation2 + $0xfc] sm:$0xf]
        %v494 = vld [vmem:[#allocation2 + $0x100] sm:$0xf]
        %v495 = vld [vmem:[#allocation2 + $0x104] sm:$0xf]
        %v496 = vld [vmem:[#allocation2 + $0x108] sm:$0xf]
        %v497 = vld [vmem:[#allocation2 + $0x10c] sm:$0xf]
        %v498 = vld [vmem:[#allocation2 + $0x110] sm:$0xf]
        %v499 = vld [vmem:[#allocation2 + $0x114] sm:$0xf]
        %v500 = vld [vmem:[#allocation2 + $0x118] sm:$0xf]
        %v501 = vld [vmem:[#allocation2 + $0x11c] sm:$0xf]
        %v502 = vld [vmem:[#allocation2 + $0x120] sm:$0xf]
        %v503 = vld [vmem:[#allocation2 + $0x124] sm:$0xf]
        %v504 = vld [vmem:[#allocation2 + $0x128] sm:$0xf]
        %v505 = vld [vmem:[#allocation2 + $0x12c] sm:$0xf]
        %v506 = vld [vmem:[#allocation2 + $0x130] sm:$0xf]
        %v507 = vld [vmem:[#allocation2 + $0x134] sm:$0xf]
        %v508 = vld [vmem:[#allocation2 + $0x138] sm:$0xf]
        %v509 = vld [vmem:[#allocation2 + $0x13c] sm:$0xf]
        %v510 = vld [vmem:[#allocation2 + $0x140] sm:$0xf]
        %v511 = vld [vmem:[#allocation2 + $0x144] sm:$0xf]
        %v512 = vld [vmem:[#allocation2 + $0x148] sm:$0xf]
        %v513 = vld [vmem:[#allocation2 + $0x14c] sm:$0xf]
        %v514 = vld [vmem:[#allocation2 + $0x150] sm:$0xf]
        %v515 = vld [vmem:[#allocation2 + $0x154] sm:$0xf]
        %v516 = vld [vmem:[#allocation2 + $0x158] sm:$0xf]
        %v517 = vld [vmem:[#allocation2 + $0x15c] sm:$0xf]
        %v518 = vld [vmem:[#allocation2 + $0x160] sm:$0xf]
        %v519 = vld [vmem:[#allocation2 + $0x164] sm:$0xf]
        %v520 = vld [vmem:[#allocation2 + $0x168] sm:$0xf]
        %v521 = vld [vmem:[#allocation2 + $0x16c] sm:$0xf]
        %v522 = vld [vmem:[#allocation2 + $0x170] sm:$0xf]
        %v523 = vld [vmem:[#allocation2 + $0x174] sm:$0xf]
        %v524 = vld [vmem:[#allocation2 + $0x178] sm:$0xf]
        %v525 = vld [vmem:[#allocation2 + $0x17c] sm:$0xf]
        %v526 = vld [vmem:[#allocation2 + $0x180] sm:$0xf]
        %v527 = vld [vmem:[#allocation2 + $0x184] sm:$0xf]
        %v528 = vld [vmem:[#allocation2 + $0x188] sm:$0xf]
        %v529 = vld [vmem:[#allocation2 + $0x18c] sm:$0xf]
        %v530 = vld [vmem:[#allocation2 + $0x190] sm:$0xf]
        %v531 = vld [vmem:[#allocation2 + $0x194] sm:$0xf]
        %v532 = vld [vmem:[#allocation2 + $0x198] sm:$0xf]
        %v533 = vld [vmem:[#allocation2 + $0x19c] sm:$0xf]
        %v534 = vld [vmem:[#allocation2 + $0x1a0] sm:$0xf]
        %v535 = vld [vmem:[#allocation2 + $0x1a4] sm:$0xf]
        %v536 = vld [vmem:[#allocation2 + $0x1a8] sm:$0xf]
        %v537 = vld [vmem:[#allocation2 + $0x1ac] sm:$0xf]
        %v538 = vld [vmem:[#allocation2 + $0x1b0] sm:$0xf]
        %v539 = vld [vmem:[#allocation2 + $0x1b4] sm:$0xf]
        %v540 = vld [vmem:[#allocation2 + $0x1b8] sm:$0xf]
        %v541 = vld [vmem:[#allocation2 + $0x1bc] sm:$0xf]
        %v542 = vlaneseq
        %v543 = vshrl.u32 %v542, 7
        %v544 = vsub.s32 0, %v543
        %v545 = vrot.slane %v414, %v544
        %v658 = vunpack.c.l.b16 %v430
        %v659 = vunpack.c.l.b16 %v431
        %v660 = vunpack.c.l.b16 %v432
        %v661 = vunpack.c.l.b16 %v433
        %v662 = vunpack.c.l.b16 %v434
        %v663 = vunpack.c.l.b16 %v435
        %v664 = vunpack.c.l.b16 %v436
        %v665 = vunpack.c.l.b16 %v437
        %v666 = vunpack.c.l.b16 %v438
        %v667 = vunpack.c.l.b16 %v439
        %v668 = vunpack.c.l.b16 %v440
        %v669 = vunpack.c.l.b16 %v441
        %v670 = vunpack.c.l.b16 %v442
        %v671 = vunpack.c.l.b16 %v443
        %v672 = vunpack.c.l.b16 %v444
        %v673 = vunpack.c.l.b16 %v445
        %v674 = vunpack.c.l.b16 %v446
        %v675 = vunpack.c.l.b16 %v447
        %v676 = vunpack.c.l.b16 %v448
        %v677 = vunpack.c.l.b16 %v449
        %v678 = vunpack.c.l.b16 %v450
        %v679 = vunpack.c.l.b16 %v451
        %v680 = vunpack.c.l.b16 %v452
        %v681 = vunpack.c.l.b16 %v453
        %v682 = vunpack.c.l.b16 %v454
        %v683 = vunpack.c.l.b16 %v455
        %v684 = vunpack.c.l.b16 %v456
        %v685 = vunpack.c.l.b16 %v457
        %v686 = vunpack.c.l.b16 %v458
        %v687 = vunpack.c.l.b16 %v459
        %v688 = vunpack.c.l.b16 %v460
        %v689 = vunpack.c.l.b16 %v461
        %v690 = vunpack.c.l.b16 %v462
        %v691 = vunpack.c.l.b16 %v463
        %v692 = vunpack.c.l.b16 %v464
        %v693 = vunpack.c.l.b16 %v465
        %v694 = vunpack.c.l.b16 %v466
        %v695 = vunpack.c.l.b16 %v467
        %v696 = vunpack.c.l.b16 %v468
        %v697 = vunpack.c.l.b16 %v469
        %v698 = vunpack.c.l.b16 %v470
        %v699 = vunpack.c.l.b16 %v471
        %v700 = vunpack.c.l.b16 %v472
        %v701 = vunpack.c.l.b16 %v473
        %v702 = vunpack.c.l.b16 %v474
        %v703 = vunpack.c.l.b16 %v475
        %v704 = vunpack.c.l.b16 %v476
        %v705 = vunpack.c.l.b16 %v477
        %v706 = vunpack.c.l.b16 %v478
        %v707 = vunpack.c.l.b16 %v479
        %v708 = vunpack.c.l.b16 %v480
        %v709 = vunpack.c.l.b16 %v481
        %v710 = vunpack.c.l.b16 %v482
        %v711 = vunpack.c.l.b16 %v483
        %v712 = vunpack.c.l.b16 %v484
        %v713 = vunpack.c.l.b16 %v485
        %v714 = vunpack.c.l.b16 %v486
        %v715 = vunpack.c.l.b16 %v487
        %v716 = vunpack.c.l.b16 %v488
        %v717 = vunpack.c.l.b16 %v489
        %v718 = vunpack.c.l.b16 %v490
        %v719 = vunpack.c.l.b16 %v491
        %v720 = vunpack.c.l.b16 %v492
        %v721 = vunpack.c.l.b16 %v493
        %v722 = vunpack.c.l.b16 %v494
        %v723 = vunpack.c.l.b16 %v495
        %v724 = vunpack.c.l.b16 %v496
        %v725 = vunpack.c.l.b16 %v497
        %v726 = vunpack.c.l.b16 %v498
        %v727 = vunpack.c.l.b16 %v499
        %v728 = vunpack.c.l.b16 %v500
        %v729 = vunpack.c.l.b16 %v501
        %v730 = vunpack.c.l.b16 %v502
        %v731 = vunpack.c.l.b16 %v503
        %v732 = vunpack.c.l.b16 %v504
        %v733 = vunpack.c.l.b16 %v505
        %v734 = vunpack.c.l.b16 %v506
        %v735 = vunpack.c.l.b16 %v507
        %v736 = vunpack.c.l.b16 %v508
        %v737 = vunpack.c.l.b16 %v509
        %v738 = vunpack.c.l.b16 %v510
        %v739 = vunpack.c.l.b16 %v511
        %v740 = vunpack.c.l.b16 %v512
        %v741 = vunpack.c.l.b16 %v513
        %v742 = vunpack.c.l.b16 %v514
        %v743 = vunpack.c.l.b16 %v515
        %v744 = vunpack.c.l.b16 %v516
        %v745 = vunpack.c.l.b16 %v517
        %v746 = vunpack.c.l.b16 %v518
        %v747 = vunpack.c.l.b16 %v519
        %v748 = vunpack.c.l.b16 %v520
        %v749 = vunpack.c.l.b16 %v521
        %v750 = vunpack.c.l.b16 %v522
        %v751 = vunpack.c.l.b16 %v523
        %v752 = vunpack.c.l.b16 %v524
        %v753 = vunpack.c.l.b16 %v525
        %v754 = vunpack.c.l.b16 %v526
        %v755 = vunpack.c.l.b16 %v527
        %v756 = vunpack.c.l.b16 %v528
        %v757 = vunpack.c.l.b16 %v529
        %v758 = vunpack.c.l.b16 %v530
        %v759 = vunpack.c.l.b16 %v531
        %v760 = vunpack.c.l.b16 %v532
        %v761 = vunpack.c.l.b16 %v533
        %v762 = vunpack.c.l.b16 %v534
        %v763 = vunpack.c.l.b16 %v535
        %v764 = vunpack.c.l.b16 %v536
        %v765 = vunpack.c.l.b16 %v537
        %v766 = vunpack.c.l.b16 %v538
        %v767 = vunpack.c.l.b16 %v539
        %v768 = vunpack.c.l.b16 %v540
        %v769 = vunpack.c.l.b16 %v541
        %v770 = vpack.c.b16 %v659, %v658
        %v771 = vpack.c.b16 %v661, %v660
        %v772 = vpack.c.b16 %v663, %v662
        %v773 = vpack.c.b16 %v665, %v664
        %v774 = vpack.c.b16 %v667, %v666
        %v775 = vpack.c.b16 %v669, %v668
        %v776 = vpack.c.b16 %v671, %v670
        %v777 = vpack.c.b16 %v673, %v672
        %v778 = vpack.c.b16 %v675, %v674
        %v779 = vpack.c.b16 %v677, %v676
        %v780 = vpack.c.b16 %v679, %v678
        %v781 = vpack.c.b16 %v681, %v680
        %v782 = vpack.c.b16 %v683, %v682
        %v783 = vpack.c.b16 %v685, %v684
        %v784 = vpack.c.b16 %v687, %v686
        %v785 = vpack.c.b16 %v689, %v688
        %v786 = vpack.c.b16 %v691, %v690
        %v787 = vpack.c.b16 %v693, %v692
        %v788 = vpack.c.b16 %v695, %v694
        %v789 = vpack.c.b16 %v697, %v696
        %v790 = vpack.c.b16 %v699, %v698
        %v791 = vpack.c.b16 %v701, %v700
        %v792 = vpack.c.b16 %v703, %v702
        %v793 = vpack.c.b16 %v705, %v704
        %v794 = vpack.c.b16 %v707, %v706
        %v795 = vpack.c.b16 %v709, %v708
        %v796 = vpack.c.b16 %v711, %v710
        %v797 = vpack.c.b16 %v713, %v712
        %v798 = vpack.c.b16 %v715, %v714
        %v799 = vpack.c.b16 %v717, %v716
        %v800 = vpack.c.b16 %v719, %v718
        %v801 = vpack.c.b16 %v721, %v720
        %v802 = vpack.c.b16 %v723, %v722
        %v803 = vpack.c.b16 %v725, %v724
        %v804 = vpack.c.b16 %v727, %v726
        %v805 = vpack.c.b16 %v729, %v728
        %v806 = vpack.c.b16 %v731, %v730
        %v807 = vpack.c.b16 %v733, %v732
        %v808 = vpack.c.b16 %v735, %v734
        %v809 = vpack.c.b16 %v737, %v736
        %v810 = vpack.c.b16 %v739, %v738
        %v811 = vpack.c.b16 %v741, %v740
        %v812 = vpack.c.b16 %v743, %v742
        %v813 = vpack.c.b16 %v745, %v744
        %v814 = vpack.c.b16 %v747, %v746
        %v815 = vpack.c.b16 %v749, %v748
        %v816 = vpack.c.b16 %v751, %v750
        %v817 = vpack.c.b16 %v753, %v752
        %v818 = vpack.c.b16 %v755, %v754
        %v819 = vpack.c.b16 %v757, %v756
        %v820 = vpack.c.b16 %v759, %v758
        %v821 = vpack.c.b16 %v761, %v760
        %v822 = vpack.c.b16 %v763, %v762
        %v823 = vpack.c.b16 %v765, %v764
        %v824 = vpack.c.b16 %v767, %v766
        %v825 = vpack.c.b16 %v769, %v768
        %882 = vmatprep.subr.bf16.mxu0 0
        %883 = vmatpush1.bf16.msra.mxu0 %v770
        %884 = vmatprep.subr.bf16.mxu0 0
        %885 = vmatpush1.bf16.msra.mxu0 %v771
        %886 = vmatprep.subr.bf16.mxu0 0
        %887 = vmatpush1.bf16.msra.mxu0 %v772
        %888 = vmatprep.subr.bf16.mxu0 0
        %889 = vmatpush1.bf16.msra.mxu0 %v773
        %890 = vmatprep.subr.bf16.mxu0 0
        %891 = vmatpush1.bf16.msra.mxu0 %v774
        %892 = vmatprep.subr.bf16.mxu0 0
        %893 = vmatpush1.bf16.msra.mxu0 %v775
        %894 = vmatprep.subr.bf16.mxu0 0
        %895 = vmatpush1.bf16.msra.mxu0 %v776
        %896 = vmatprep.subr.bf16.mxu0 0
        %897 = vmatpush1.bf16.msra.mxu0 %v777
        %898 = vmatprep.subr.bf16.mxu0 0
        %899 = vmatpush1.bf16.msra.mxu0 %v778
        %900 = vmatprep.subr.bf16.mxu0 0
        %901 = vmatpush1.bf16.msra.mxu0 %v779
        %902 = vmatprep.subr.bf16.mxu0 0
        %903 = vmatpush1.bf16.msra.mxu0 %v780
        %904 = vmatprep.subr.bf16.mxu0 0
        %905 = vmatpush1.bf16.msra.mxu0 %v781
        %906 = vmatprep.subr.bf16.mxu0 0
        %907 = vmatpush1.bf16.msra.mxu0 %v782
        %908 = vmatprep.subr.bf16.mxu0 0
        %909 = vmatpush1.bf16.msra.mxu0 %v783
        %910 = vmatprep.subr.bf16.mxu0 0
        %911 = vmatpush1.bf16.msra.mxu0 %v784
        %912 = vmatprep.subr.bf16.mxu0 0
        %913 = vmatpush1.bf16.msra.mxu0 %v785
        %914 = vmatprep.mubr.bf16.mxu0 %v424
        %915 = vmatmul.mubr.bf16.gmra.mrb[0].mxu0 %v423
        %v916 = vpop.f32.mrb[0].mxu0
        %v917 = vadd.f32 %v545, %v916
        %v918 = vpop.f32.mrb[0].mxu0
        %v919 = vpop.f32.mrb[0].mxu0
        %v920 = vpop.f32.mrb[0].mxu0
        %921 = vdwg.mxu0
        %922 = vmatprep.subr.bf16.mxu0 0
        %923 = vmatpush1.bf16.msra.mxu0 %v786
        %924 = vmatprep.subr.bf16.mxu0 0
        %925 = vmatpush1.bf16.msra.mxu0 %v787
        %926 = vmatprep.subr.bf16.mxu0 0
        %927 = vmatpush1.bf16.msra.mxu0 %v788
        %928 = vmatprep.subr.bf16.mxu0 0
        %929 = vmatpush1.bf16.msra.mxu0 %v789
        %930 = vmatprep.subr.bf16.mxu0 0
        %931 = vmatpush1.bf16.msra.mxu0 %v790
        %932 = vmatprep.subr.bf16.mxu0 0
        %933 = vmatpush1.bf16.msra.mxu0 %v791
        %934 = vmatprep.subr.bf16.mxu0 0
        %935 = vmatpush1.bf16.msra.mxu0 %v792
        %936 = vmatprep.subr.bf16.mxu0 0
        %937 = vmatpush1.bf16.msra.mxu0 %v793
        %938 = vmatprep.subr.bf16.mxu0 0
        %939 = vmatpush1.bf16.msra.mxu0 %v794
        %940 = vmatprep.subr.bf16.mxu0 0
        %941 = vmatpush1.bf16.msra.mxu0 %v795
        %942 = vmatprep.subr.bf16.mxu0 0
        %943 = vmatpush1.bf16.msra.mxu0 %v796
        %944 = vmatprep.subr.bf16.mxu0 0
        %945 = vmatpush1.bf16.msra.mxu0 %v797
        %946 = vmatprep.subr.bf16.mxu0 0
        %947 = vmatpush1.bf16.msra.mxu0 %v798
        %948 = vmatprep.subr.bf16.mxu0 0
        %949 = vmatpush1.bf16.msra.mxu0 %v799
        %950 = vmatprep.subr.bf16.mxu0 0
        %951 = vmatpush1.bf16.msra.mxu0 %v800
        %952 = vmatprep.subr.bf16.mxu0 0
        %953 = vmatpush1.bf16.msra.mxu0 %v801
        %954 = vmatprep.mubr.bf16.mxu0 %v426
        %955 = vmatmul.mubr.bf16.gmra.mrb[0].mxu0 %v425
        %v956 = vpop.f32.mrb[0].mxu0
        %v957 = vadd.f32 %v917, %v956
        %v958 = vpop.f32.mrb[0].mxu0
        %v959 = vpop.f32.mrb[0].mxu0
        %v960 = vpop.f32.mrb[0].mxu0
        %961 = vdwg.mxu0
        %962 = vmatprep.subr.bf16.mxu0 0
        %963 = vmatpush1.bf16.msra.mxu0 %v802
        %964 = vmatprep.subr.bf16.mxu0 0
        %965 = vmatpush1.bf16.msra.mxu0 %v803
        %966 = vmatprep.subr.bf16.mxu0 0
        %967 = vmatpush1.bf16.msra.mxu0 %v804
        %968 = vmatprep.subr.bf16.mxu0 0
        %969 = vmatpush1.bf16.msra.mxu0 %v805
        %970 = vmatprep.subr.bf16.mxu0 0
        %971 = vmatpush1.bf16.msra.mxu0 %v806
        %972 = vmatprep.subr.bf16.mxu0 0
        %973 = vmatpush1.bf16.msra.mxu0 %v807
        %974 = vmatprep.subr.bf16.mxu0 0
        %975 = vmatpush1.bf16.msra.mxu0 %v808
        %976 = vmatprep.subr.bf16.mxu0 0
        %977 = vmatpush1.bf16.msra.mxu0 %v809
        %978 = vmatprep.subr.bf16.mxu0 0
        %979 = vmatpush1.bf16.msra.mxu0 %v810
        %980 = vmatprep.subr.bf16.mxu0 0
        %981 = vmatpush1.bf16.msra.mxu0 %v811
        %982 = vmatprep.subr.bf16.mxu0 0
        %983 = vmatpush1.bf16.msra.mxu0 %v812
        %984 = vmatprep.subr.bf16.mxu0 0
        %985 = vmatpush1.bf16.msra.mxu0 %v813
        %986 = vmatprep.subr.bf16.mxu0 0
        %987 = vmatpush1.bf16.msra.mxu0 %v814
        %988 = vmatprep.subr.bf16.mxu0 0
        %989 = vmatpush1.bf16.msra.mxu0 %v815
        %990 = vmatprep.subr.bf16.mxu0 0
        %991 = vmatpush1.bf16.msra.mxu0 %v816
        %992 = vmatprep.subr.bf16.mxu0 0
        %993 = vmatpush1.bf16.msra.mxu0 %v817
        %994 = vmatprep.mubr.bf16.mxu0 %v428
        %995 = vmatmul.mubr.bf16.gmra.mrb[0].mxu0 %v427
        %v996 = vpop.f32.mrb[0].mxu0
        %v997 = vadd.f32 %v957, %v996
        %v998 = vpop.f32.mrb[0].mxu0
        %v999 = vpop.f32.mrb[0].mxu0
        %v1000 = vpop.f32.mrb[0].mxu0
        %1001 = vdwg.mxu0
        %1002 = vmatprep.subr.bf16.mxu0 0
        %1003 = vmatpush1.bf16.msra.mxu0 %v818
        %1004 = vmatprep.subr.bf16.mxu0 0
        %1005 = vmatpush1.bf16.msra.mxu0 %v819
        %1006 = vmatprep.subr.bf16.mxu0 0
        %1007 = vmatpush1.bf16.msra.mxu0 %v820
        %1008 = vmatprep.subr.bf16.mxu0 0
        %1009 = vmatpush1.bf16.msra.mxu0 %v821
        %1010 = vmatprep.subr.bf16.mxu0 0
        %1011 = vmatpush1.bf16.msra.mxu0 %v822
        %1012 = vmatprep.subr.bf16.mxu0 0
        %1013 = vmatpush1.bf16.msra.mxu0 %v823
        %1014 = vmatprep.subr.bf16.mxu0 0
        %1015 = vmatpush1.bf16.msra.mxu0 %v824
        %1016 = vmatprep.subr.bf16.mxu0 0
        %1017 = vmatpush1.bf16.msra.mxu0 %v825
        %1018 = vmatprep.subr.bf16.mxu0 0
        %1019 = vmatpush1.bf16.msra.mxu0 0
        %1020 = vmatprep.subr.bf16.mxu0 0
        %1021 = vmatpush1.bf16.msra.mxu0 0
        %1022 = vmatprep.subr.bf16.mxu0 0
        %1023 = vmatpush1.bf16.msra.mxu0 0
        %1024 = vmatprep.subr.bf16.mxu0 0
        %1025 = vmatpush1.bf16.msra.mxu0 0
        %1026 = vmatprep.subr.bf16.mxu0 0
        %1027 = vmatpush1.bf16.msra.mxu0 0
        %1028 = vmatprep.subr.bf16.mxu0 0
        %1029 = vmatpush1.bf16.msra.mxu0 0
        %1030 = vmatprep.subr.bf16.mxu0 0
        %1031 = vmatpush1.bf16.msra.mxu0 0
        %1032 = vmatprep.subr.bf16.mxu0 0
        %1033 = vmatpush1.bf16.msra.mxu0 0
        %1034 = vmatprep.mubr.bf16.mxu0 0
        %1035 = vmatmul.mubr.bf16.gmra.mrb[0].mxu0 %v429
        %v1036 = vpop.f32.mrb[0].mxu0
        %v1037 = vadd.f32 %v997, %v1036
        %v1038 = vpop.f32.mrb[0].mxu0
        %v1039 = vpop.f32.mrb[0].mxu0
        %v1040 = vpop.f32.mrb[0].mxu0
        %1041 = vdwg.mxu0
        %v1042 = vmax.f32 %v1037, 0.0
        %v1043 = vpack.c.bf16 %v1042, %v1042
        %v1044 = vld [vmem:[#allocation5] sm:$0xf]
        %v1045 = vld [vmem:[#allocation5 + $0x4] sm:$0xf]
        %v1046 = vld [vmem:[#allocation5 + $0x8] sm:$0xf]
        %v1047 = vld [vmem:[#allocation5 + $0xc] sm:$0xf]
        %v1048 = vld [vmem:[#allocation5 + $0x10] sm:$0xf]
        %v1049 = vld [vmem:[#allocation5 + $0x14] sm:$0xf]
        %v1050 = vld [vmem:[#allocation5 + $0x18] sm:$0xf]
        %v1051 = vld [vmem:[#allocation5 + $0x1c] sm:$0xf]
        %v1052 = vld [vmem:[#allocation5 + $0x20] sm:$0xf]
        %v1053 = vld [vmem:[#allocation5 + $0x24] sm:$0xf]
        %v1054 = vld [vmem:[#allocation5 + $0x28] sm:$0xf]
        %v1055 = vld [vmem:[#allocation5 + $0x2c] sm:$0xf]
        %v1056 = vld [vmem:[#allocation5 + $0x30] sm:$0xf]
        %v1057 = vld [vmem:[#allocation5 + $0x34] sm:$0xf]
        %v1058 = vld [vmem:[#allocation5 + $0x38] sm:$0xf]
        %v1059 = vld [vmem:[#allocation5 + $0x3c] sm:$0xf]
        %v1060 = vlaneseq
        %v1061 = vshrl.u32 %v1060, 7
        %v1062 = vsub.s32 1, %v1061
        %v1063 = vrot.slane %v414, %v1062
        %v1080 = vunpack.c.l.b16 %v1044
        %v1081 = vunpack.c.l.b16 %v1045
        %v1082 = vunpack.c.l.b16 %v1046
        %v1083 = vunpack.c.l.b16 %v1047
        %v1084 = vunpack.c.l.b16 %v1048
        %v1085 = vunpack.c.l.b16 %v1049
        %v1086 = vunpack.c.l.b16 %v1050
        %v1087 = vunpack.c.l.b16 %v1051
        %v1088 = vunpack.c.l.b16 %v1052
        %v1089 = vunpack.c.l.b16 %v1053
        %v1090 = vunpack.c.l.b16 %v1054
        %v1091 = vunpack.c.l.b16 %v1055
        %v1092 = vunpack.c.l.b16 %v1056
        %v1093 = vunpack.c.l.b16 %v1057
        %v1094 = vunpack.c.l.b16 %v1058
        %v1095 = vunpack.c.l.b16 %v1059
        %v1096 = vpack.c.b16 %v1081, %v1080
        %v1097 = vpack.c.b16 %v1083, %v1082
        %v1098 = vpack.c.b16 %v1085, %v1084
        %v1099 = vpack.c.b16 %v1087, %v1086
        %v1100 = vpack.c.b16 %v1089, %v1088
        %v1101 = vpack.c.b16 %v1091, %v1090
        %v1102 = vpack.c.b16 %v1093, %v1092
        %v1103 = vpack.c.b16 %v1095, %v1094
        %1112 = vmatprep.subr.bf16.mxu0 0
        %1113 = vmatpush1.bf16.msra.mxu0 %v1096
        %1114 = vmatprep.subr.bf16.mxu0 0
        %1115 = vmatpush1.bf16.msra.mxu0 %v1097
        %1116 = vmatprep.subr.bf16.mxu0 0
        %1117 = vmatpush1.bf16.msra.mxu0 %v1098
        %1118 = vmatprep.subr.bf16.mxu0 0
        %1119 = vmatpush1.bf16.msra.mxu0 %v1099
        %1120 = vmatprep.subr.bf16.mxu0 0
        %1121 = vmatpush1.bf16.msra.mxu0 %v1100
        %1122 = vmatprep.subr.bf16.mxu0 0
        %1123 = vmatpush1.bf16.msra.mxu0 %v1101
        %1124 = vmatprep.subr.bf16.mxu0 0
        %1125 = vmatpush1.bf16.msra.mxu0 %v1102
        %1126 = vmatprep.subr.bf16.mxu0 0
        %1127 = vmatpush1.bf16.msra.mxu0 %v1103
        %1128 = vmatprep.subr.bf16.mxu0 0
        %1129 = vmatpush1.bf16.msra.mxu0 0
        %1130 = vmatprep.subr.bf16.mxu0 0
        %1131 = vmatpush1.bf16.msra.mxu0 0
        %1132 = vmatprep.subr.bf16.mxu0 0
        %1133 = vmatpush1.bf16.msra.mxu0 0
        %1134 = vmatprep.subr.bf16.mxu0 0
        %1135 = vmatpush1.bf16.msra.mxu0 0
        %1136 = vmatprep.subr.bf16.mxu0 0
        %1137 = vmatpush1.bf16.msra.mxu0 0
        %1138 = vmatprep.subr.bf16.mxu0 0
        %1139 = vmatpush1.bf16.msra.mxu0 0
        %1140 = vmatprep.subr.bf16.mxu0 0
        %1141 = vmatpush1.bf16.msra.mxu0 0
        %1142 = vmatprep.subr.bf16.mxu0 0
        %1143 = vmatpush1.bf16.msra.mxu0 0
        %1144 = vmatprep.mubr.bf16.mxu0 0
        %1145 = vmatmul.mubr.bf16.gmra.mrb[0].mxu0 %v1043
        %v1146 = vpop.f32.mrb[0].mxu0
        %v1147 = vadd.f32 %v1063, %v1146
        %v1148 = vpop.f32.mrb[0].mxu0
        %v1149 = vpop.f32.mrb[0].mxu0
        %v1150 = vpop.f32.mrb[0].mxu0
        %1151 = vdwg.mxu0
        %v1152 = vmax.f32 %v1147, 0.0
        %v1153 = vpack.c.bf16 %v1152, %v1152
        %s1154 = scalar_lea.vmem [#allocation5], 64
        %v1155 = vld [vmem:[%s1154] sm:$0xf]
        %v1156 = vld [vmem:[%s1154 + $0x4] sm:$0xf]
        %v1157 = vld [vmem:[%s1154 + $0x8] sm:$0xf]
        %v1158 = vld [vmem:[%s1154 + $0xc] sm:$0xf]
        %v1159 = vld [vmem:[%s1154 + $0x10] sm:$0xf]
        %v1160 = vld [vmem:[%s1154 + $0x14] sm:$0xf]
        %v1161 = vld [vmem:[%s1154 + $0x18] sm:$0xf]
        %v1162 = vld [vmem:[%s1154 + $0x1c] sm:$0xf]
        %v1163 = vld [vmem:[%s1154 + $0x20] sm:$0xf]
        %v1164 = vld [vmem:[%s1154 + $0x24] sm:$0xf]
        %v1165 = vld [vmem:[%s1154 + $0x28] sm:$0xf]
        %v1166 = vld [vmem:[%s1154 + $0x2c] sm:$0xf]
        %v1167 = vld [vmem:[%s1154 + $0x30] sm:$0xf]
        %v1168 = vld [vmem:[%s1154 + $0x34] sm:$0xf]
        %v1169 = vld [vmem:[%s1154 + $0x38] sm:$0xf]
        %v1170 = vld [vmem:[%s1154 + $0x3c] sm:$0xf]
        %v1171 = vlaneseq
        %v1172 = vshrl.u32 %v1171, 7
        %v1173 = vsub.s32 2, %v1172
        %v1174 = vrot.slane %v414, %v1173
        %v1191 = vunpack.c.l.b16 %v1155
        %v1192 = vunpack.c.l.b16 %v1156
        %v1193 = vunpack.c.l.b16 %v1157
        %v1194 = vunpack.c.l.b16 %v1158
        %v1195 = vunpack.c.l.b16 %v1159
        %v1196 = vunpack.c.l.b16 %v1160
        %v1197 = vunpack.c.l.b16 %v1161
        %v1198 = vunpack.c.l.b16 %v1162
        %v1199 = vunpack.c.l.b16 %v1163
        %v1200 = vunpack.c.l.b16 %v1164
        %v1201 = vunpack.c.l.b16 %v1165
        %v1202 = vunpack.c.l.b16 %v1166
        %v1203 = vunpack.c.l.b16 %v1167
        %v1204 = vunpack.c.l.b16 %v1168
        %v1205 = vunpack.c.l.b16 %v1169
        %v1206 = vunpack.c.l.b16 %v1170
        %v1207 = vpack.c.b16 %v1192, %v1191
        %v1208 = vpack.c.b16 %v1194, %v1193
        %v1209 = vpack.c.b16 %v1196, %v1195
        %v1210 = vpack.c.b16 %v1198, %v1197
        %v1211 = vpack.c.b16 %v1200, %v1199
        %v1212 = vpack.c.b16 %v1202, %v1201
        %v1213 = vpack.c.b16 %v1204, %v1203
        %v1214 = vpack.c.b16 %v1206, %v1205
        %1223 = vmatprep.subr.bf16.mxu0 0
        %1224 = vmatpush1.bf16.msra.mxu0 %v1207
        %1225 = vmatprep.subr.bf16.mxu0 0
        %1226 = vmatpush1.bf16.msra.mxu0 %v1208
        %1227 = vmatprep.subr.bf16.mxu0 0
        %1228 = vmatpush1.bf16.msra.mxu0 %v1209
        %1229 = vmatprep.subr.bf16.mxu0 0
        %1230 = vmatpush1.bf16.msra.mxu0 %v1210
        %1231 = vmatprep.subr.bf16.mxu0 0
        %1232 = vmatpush1.bf16.msra.mxu0 %v1211
        %1233 = vmatprep.subr.bf16.mxu0 0
        %1234 = vmatpush1.bf16.msra.mxu0 %v1212
        %1235 = vmatprep.subr.bf16.mxu0 0
        %1236 = vmatpush1.bf16.msra.mxu0 %v1213
        %1237 = vmatprep.subr.bf16.mxu0 0
        %1238 = vmatpush1.bf16.msra.mxu0 %v1214
        %1239 = vmatprep.subr.bf16.mxu0 0
        %1240 = vmatpush1.bf16.msra.mxu0 0
        %1241 = vmatprep.subr.bf16.mxu0 0
        %1242 = vmatpush1.bf16.msra.mxu0 0
        %1243 = vmatprep.subr.bf16.mxu0 0
        %1244 = vmatpush1.bf16.msra.mxu0 0
        %1245 = vmatprep.subr.bf16.mxu0 0
        %1246 = vmatpush1.bf16.msra.mxu0 0
        %1247 = vmatprep.subr.bf16.mxu0 0
        %1248 = vmatpush1.bf16.msra.mxu0 0
        %1249 = vmatprep.subr.bf16.mxu0 0
        %1250 = vmatpush1.bf16.msra.mxu0 0
        %1251 = vmatprep.subr.bf16.mxu0 0
        %1252 = vmatpush1.bf16.msra.mxu0 0
        %1253 = vmatprep.subr.bf16.mxu0 0
        %1254 = vmatpush1.bf16.msra.mxu0 0
        %1255 = vmatprep.mubr.bf16.mxu0 0
        %1256 = vmatmul.mubr.bf16.gmra.mrb[0].mxu0 %v1153
        %v1257 = vpop.f32.mrb[0].mxu0
        %v1258 = vadd.f32 %v1174, %v1257
        %v1259 = vpop.f32.mrb[0].mxu0
        %v1260 = vpop.f32.mrb[0].mxu0
        %v1261 = vpop.f32.mrb[0].mxu0
        %1262 = vdwg.mxu0
        %v1263 = vmax.f32 %v1258, 0.0
        %v1264 = vpack.c.bf16 %v1263, %v1263
        %s1265 = scalar_lea.vmem [#allocation5], 128
        %v1266 = vld [vmem:[%s1265] sm:$0xf]
        %v1267 = vld [vmem:[%s1265 + $0x4] sm:$0xf]
        %v1268 = vld [vmem:[%s1265 + $0x8] sm:$0xf]
        %v1269 = vld [vmem:[%s1265 + $0xc] sm:$0xf]
        %v1270 = vld [vmem:[%s1265 + $0x10] sm:$0xf]
        %v1271 = vld [vmem:[%s1265 + $0x14] sm:$0xf]
        %v1272 = vld [vmem:[%s1265 + $0x18] sm:$0xf]
        %v1273 = vld [vmem:[%s1265 + $0x1c] sm:$0xf]
        %v1274 = vld [vmem:[%s1265 + $0x20] sm:$0xf]
        %v1275 = vld [vmem:[%s1265 + $0x24] sm:$0xf]
        %v1276 = vld [vmem:[%s1265 + $0x28] sm:$0xf]
        %v1277 = vld [vmem:[%s1265 + $0x2c] sm:$0xf]
        %v1278 = vld [vmem:[%s1265 + $0x30] sm:$0xf]
        %v1279 = vld [vmem:[%s1265 + $0x34] sm:$0xf]
        %v1280 = vld [vmem:[%s1265 + $0x38] sm:$0xf]
        %v1281 = vld [vmem:[%s1265 + $0x3c] sm:$0xf]
        %v1282 = vlaneseq
        %v1283 = vshrl.u32 %v1282, 7
        %v1284 = vsub.s32 3, %v1283
        %v1285 = vrot.slane %v414, %v1284
        %v1302 = vunpack.c.l.b16 %v1266
        %v1303 = vunpack.c.l.b16 %v1267
        %v1304 = vunpack.c.l.b16 %v1268
        %v1305 = vunpack.c.l.b16 %v1269
        %v1306 = vunpack.c.l.b16 %v1270
        %v1307 = vunpack.c.l.b16 %v1271
        %v1308 = vunpack.c.l.b16 %v1272
        %v1309 = vunpack.c.l.b16 %v1273
        %v1310 = vunpack.c.l.b16 %v1274
        %v1311 = vunpack.c.l.b16 %v1275
        %v1312 = vunpack.c.l.b16 %v1276
        %v1313 = vunpack.c.l.b16 %v1277
        %v1314 = vunpack.c.l.b16 %v1278
        %v1315 = vunpack.c.l.b16 %v1279
        %v1316 = vunpack.c.l.b16 %v1280
        %v1317 = vunpack.c.l.b16 %v1281
        %v1318 = vpack.c.b16 %v1303, %v1302
        %v1319 = vpack.c.b16 %v1305, %v1304
        %v1320 = vpack.c.b16 %v1307, %v1306
        %v1321 = vpack.c.b16 %v1309, %v1308
        %v1322 = vpack.c.b16 %v1311, %v1310
        %v1323 = vpack.c.b16 %v1313, %v1312
        %v1324 = vpack.c.b16 %v1315, %v1314
        %v1325 = vpack.c.b16 %v1317, %v1316
        %1334 = vmatprep.subr.bf16.mxu0 0
        %1335 = vmatpush1.bf16.msra.mxu0 %v1318
        %1336 = vmatprep.subr.bf16.mxu0 0
        %1337 = vmatpush1.bf16.msra.mxu0 %v1319
        %1338 = vmatprep.subr.bf16.mxu0 0
        %1339 = vmatpush1.bf16.msra.mxu0 %v1320
        %1340 = vmatprep.subr.bf16.mxu0 0
        %1341 = vmatpush1.bf16.msra.mxu0 %v1321
        %1342 = vmatprep.subr.bf16.mxu0 0
        %1343 = vmatpush1.bf16.msra.mxu0 %v1322
        %1344 = vmatprep.subr.bf16.mxu0 0
        %1345 = vmatpush1.bf16.msra.mxu0 %v1323
        %1346 = vmatprep.subr.bf16.mxu0 0
        %1347 = vmatpush1.bf16.msra.mxu0 %v1324
        %1348 = vmatprep.subr.bf16.mxu0 0
        %1349 = vmatpush1.bf16.msra.mxu0 %v1325
        %1350 = vmatprep.subr.bf16.mxu0 0
        %1351 = vmatpush1.bf16.msra.mxu0 0
        %1352 = vmatprep.subr.bf16.mxu0 0
        %1353 = vmatpush1.bf16.msra.mxu0 0
        %1354 = vmatprep.subr.bf16.mxu0 0
        %1355 = vmatpush1.bf16.msra.mxu0 0
        %1356 = vmatprep.subr.bf16.mxu0 0
        %1357 = vmatpush1.bf16.msra.mxu0 0
        %1358 = vmatprep.subr.bf16.mxu0 0
        %1359 = vmatpush1.bf16.msra.mxu0 0
        %1360 = vmatprep.subr.bf16.mxu0 0
        %1361 = vmatpush1.bf16.msra.mxu0 0
        %1362 = vmatprep.subr.bf16.mxu0 0
        %1363 = vmatpush1.bf16.msra.mxu0 0
        %1364 = vmatprep.subr.bf16.mxu0 0
        %1365 = vmatpush1.bf16.msra.mxu0 0
        %1366 = vmatprep.mubr.bf16.mxu0 0
        %1367 = vmatmul.mubr.bf16.gmra.mrb[0].mxu0 %v1264
        %v1368 = vpop.f32.mrb[0].mxu0
        %v1369 = vadd.f32 %v1285, %v1368
        %v1370 = vpop.f32.mrb[0].mxu0
        %v1371 = vpop.f32.mrb[0].mxu0
        %v1372 = vpop.f32.mrb[0].mxu0
        %1373 = vdwg.mxu0
        %v1374 = vmax.f32 %v1369, 0.0
        %v1375 = vpack.c.bf16 %v1374, %v1374
        %s1376 = scalar_lea.vmem [#allocation5], 192
        %v1377 = vld [vmem:[%s1376] sm:$0xf]
        %v1378 = vld [vmem:[%s1376 + $0x4] sm:$0xf]
        %v1379 = vld [vmem:[%s1376 + $0x8] sm:$0xf]
        %v1380 = vld [vmem:[%s1376 + $0xc] sm:$0xf]
        %v1381 = vld [vmem:[%s1376 + $0x10] sm:$0xf]
        %v1382 = vld [vmem:[%s1376 + $0x14] sm:$0xf]
        %v1383 = vld [vmem:[%s1376 + $0x18] sm:$0xf]
        %v1384 = vld [vmem:[%s1376 + $0x1c] sm:$0xf]
        %v1385 = vld [vmem:[%s1376 + $0x20] sm:$0xf]
        %v1386 = vld [vmem:[%s1376 + $0x24] sm:$0xf]
        %v1387 = vld [vmem:[%s1376 + $0x28] sm:$0xf]
        %v1388 = vld [vmem:[%s1376 + $0x2c] sm:$0xf]
        %v1389 = vld [vmem:[%s1376 + $0x30] sm:$0xf]
        %v1390 = vld [vmem:[%s1376 + $0x34] sm:$0xf]
        %v1391 = vld [vmem:[%s1376 + $0x38] sm:$0xf]
        %v1392 = vld [vmem:[%s1376 + $0x3c] sm:$0xf]
        %v1393 = vlaneseq
        %v1394 = vshrl.u32 %v1393, 7
        %v1395 = vsub.s32 4, %v1394
        %v1396 = vrot.slane %v414, %v1395
        %v1413 = vunpack.c.l.b16 %v1377
        %v1414 = vunpack.c.l.b16 %v1378
        %v1415 = vunpack.c.l.b16 %v1379
        %v1416 = vunpack.c.l.b16 %v1380
        %v1417 = vunpack.c.l.b16 %v1381
        %v1418 = vunpack.c.l.b16 %v1382
        %v1419 = vunpack.c.l.b16 %v1383
        %v1420 = vunpack.c.l.b16 %v1384
        %v1421 = vunpack.c.l.b16 %v1385
        %v1422 = vunpack.c.l.b16 %v1386
        %v1423 = vunpack.c.l.b16 %v1387
        %v1424 = vunpack.c.l.b16 %v1388
        %v1425 = vunpack.c.l.b16 %v1389
        %v1426 = vunpack.c.l.b16 %v1390
        %v1427 = vunpack.c.l.b16 %v1391
        %v1428 = vunpack.c.l.b16 %v1392
        %v1429 = vpack.c.b16 %v1414, %v1413
        %v1430 = vpack.c.b16 %v1416, %v1415
        %v1431 = vpack.c.b16 %v1418, %v1417
        %v1432 = vpack.c.b16 %v1420, %v1419
        %v1433 = vpack.c.b16 %v1422, %v1421
        %v1434 = vpack.c.b16 %v1424, %v1423
        %v1435 = vpack.c.b16 %v1426, %v1425
        %v1436 = vpack.c.b16 %v1428, %v1427
        %1445 = vmatprep.subr.bf16.mxu0 0
        %1446 = vmatpush1.bf16.msra.mxu0 %v1429
        %1447 = vmatprep.subr.bf16.mxu0 0
        %1448 = vmatpush1.bf16.msra.mxu0 %v1430
        %1449 = vmatprep.subr.bf16.mxu0 0
        %1450 = vmatpush1.bf16.msra.mxu0 %v1431
        %1451 = vmatprep.subr.bf16.mxu0 0
        %1452 = vmatpush1.bf16.msra.mxu0 %v1432
        %1453 = vmatprep.subr.bf16.mxu0 0
        %1454 = vmatpush1.bf16.msra.mxu0 %v1433
        %1455 = vmatprep.subr.bf16.mxu0 0
        %1456 = vmatpush1.bf16.msra.mxu0 %v1434
        %1457 = vmatprep.subr.bf16.mxu0 0
        %1458 = vmatpush1.bf16.msra.mxu0 %v1435
        %1459 = vmatprep.subr.bf16.mxu0 0
        %1460 = vmatpush1.bf16.msra.mxu0 %v1436
        %1461 = vmatprep.subr.bf16.mxu0 0
        %1462 = vmatpush1.bf16.msra.mxu0 0
        %1463 = vmatprep.subr.bf16.mxu0 0
        %1464 = vmatpush1.bf16.msra.mxu0 0
        %1465 = vmatprep.subr.bf16.mxu0 0
        %1466 = vmatpush1.bf16.msra.mxu0 0
        %1467 = vmatprep.subr.bf16.mxu0 0
        %1468 = vmatpush1.bf16.msra.mxu0 0
        %1469 = vmatprep.subr.bf16.mxu0 0
        %1470 = vmatpush1.bf16.msra.mxu0 0
        %1471 = vmatprep.subr.bf16.mxu0 0
        %1472 = vmatpush1.bf16.msra.mxu0 0
        %1473 = vmatprep.subr.bf16.mxu0 0
        %1474 = vmatpush1.bf16.msra.mxu0 0
        %1475 = vmatprep.subr.bf16.mxu0 0
        %1476 = vmatpush1.bf16.msra.mxu0 0
        %1477 = vmatprep.mubr.bf16.mxu0 0
        %1478 = vmatmul.mubr.bf16.gmra.mrb[0].mxu0 %v1375
        %v1479 = vpop.f32.mrb[0].mxu0
        %v1480 = vadd.f32 %v1396, %v1479
        %v1481 = vpop.f32.mrb[0].mxu0
        %v1482 = vpop.f32.mrb[0].mxu0
        %v1483 = vpop.f32.mrb[0].mxu0
        %1484 = vdwg.mxu0
        %v1485 = vmax.f32 %v1480, 0.0
        %v1486 = vpack.c.bf16 %v1485, %v1485
        %s1487 = scalar_lea.vmem [#allocation5], 256
        %v1488 = vld [vmem:[%s1487] sm:$0xf]
        %v1489 = vld [vmem:[%s1487 + $0x4] sm:$0xf]
        %v1490 = vld [vmem:[%s1487 + $0x8] sm:$0xf]
        %v1491 = vld [vmem:[%s1487 + $0xc] sm:$0xf]
        %v1492 = vld [vmem:[%s1487 + $0x10] sm:$0xf]
        %v1493 = vld [vmem:[%s1487 + $0x14] sm:$0xf]
        %v1494 = vld [vmem:[%s1487 + $0x18] sm:$0xf]
        %v1495 = vld [vmem:[%s1487 + $0x1c] sm:$0xf]
        %v1496 = vld [vmem:[%s1487 + $0x20] sm:$0xf]
        %v1497 = vld [vmem:[%s1487 + $0x24] sm:$0xf]
        %v1498 = vld [vmem:[%s1487 + $0x28] sm:$0xf]
        %v1499 = vld [vmem:[%s1487 + $0x2c] sm:$0xf]
        %v1500 = vld [vmem:[%s1487 + $0x30] sm:$0xf]
        %v1501 = vld [vmem:[%s1487 + $0x34] sm:$0xf]
        %v1502 = vld [vmem:[%s1487 + $0x38] sm:$0xf]
        %v1503 = vld [vmem:[%s1487 + $0x3c] sm:$0xf]
        %v1504 = vlaneseq
        %v1505 = vshrl.u32 %v1504, 7
        %v1506 = vsub.s32 5, %v1505
        %v1507 = vrot.slane %v414, %v1506
        %v1524 = vunpack.c.l.b16 %v1488
        %v1525 = vunpack.c.l.b16 %v1489
        %v1526 = vunpack.c.l.b16 %v1490
        %v1527 = vunpack.c.l.b16 %v1491
        %v1528 = vunpack.c.l.b16 %v1492
        %v1529 = vunpack.c.l.b16 %v1493
        %v1530 = vunpack.c.l.b16 %v1494
        %v1531 = vunpack.c.l.b16 %v1495
        %v1532 = vunpack.c.l.b16 %v1496
        %v1533 = vunpack.c.l.b16 %v1497
        %v1534 = vunpack.c.l.b16 %v1498
        %v1535 = vunpack.c.l.b16 %v1499
        %v1536 = vunpack.c.l.b16 %v1500
        %v1537 = vunpack.c.l.b16 %v1501
        %v1538 = vunpack.c.l.b16 %v1502
        %v1539 = vunpack.c.l.b16 %v1503
        %v1540 = vpack.c.b16 %v1525, %v1524
        %v1541 = vpack.c.b16 %v1527, %v1526
        %v1542 = vpack.c.b16 %v1529, %v1528
        %v1543 = vpack.c.b16 %v1531, %v1530
        %v1544 = vpack.c.b16 %v1533, %v1532
        %v1545 = vpack.c.b16 %v1535, %v1534
        %v1546 = vpack.c.b16 %v1537, %v1536
        %v1547 = vpack.c.b16 %v1539, %v1538
        %1556 = vmatprep.subr.bf16.mxu0 0
        %1557 = vmatpush1.bf16.msra.mxu0 %v1540
        %1558 = vmatprep.subr.bf16.mxu0 0
        %1559 = vmatpush1.bf16.msra.mxu0 %v1541
        %1560 = vmatprep.subr.bf16.mxu0 0
        %1561 = vmatpush1.bf16.msra.mxu0 %v1542
        %1562 = vmatprep.subr.bf16.mxu0 0
        %1563 = vmatpush1.bf16.msra.mxu0 %v1543
        %1564 = vmatprep.subr.bf16.mxu0 0
        %1565 = vmatpush1.bf16.msra.mxu0 %v1544
        %1566 = vmatprep.subr.bf16.mxu0 0
        %1567 = vmatpush1.bf16.msra.mxu0 %v1545
        %1568 = vmatprep.subr.bf16.mxu0 0
        %1569 = vmatpush1.bf16.msra.mxu0 %v1546
        %1570 = vmatprep.subr.bf16.mxu0 0
        %1571 = vmatpush1.bf16.msra.mxu0 %v1547
        %1572 = vmatprep.subr.bf16.mxu0 0
        %1573 = vmatpush1.bf16.msra.mxu0 0
        %1574 = vmatprep.subr.bf16.mxu0 0
        %1575 = vmatpush1.bf16.msra.mxu0 0
        %1576 = vmatprep.subr.bf16.mxu0 0
        %1577 = vmatpush1.bf16.msra.mxu0 0
        %1578 = vmatprep.subr.bf16.mxu0 0
        %1579 = vmatpush1.bf16.msra.mxu0 0
        %1580 = vmatprep.subr.bf16.mxu0 0
        %1581 = vmatpush1.bf16.msra.mxu0 0
        %1582 = vmatprep.subr.bf16.mxu0 0
        %1583 = vmatpush1.bf16.msra.mxu0 0
        %1584 = vmatprep.subr.bf16.mxu0 0
        %1585 = vmatpush1.bf16.msra.mxu0 0
        %1586 = vmatprep.subr.bf16.mxu0 0
        %1587 = vmatpush1.bf16.msra.mxu0 0
        %1588 = vmatprep.mubr.bf16.mxu0 0
        %1589 = vmatmul.mubr.bf16.gmra.mrb[0].mxu0 %v1486
        %v1590 = vpop.f32.mrb[0].mxu0
        %v1591 = vadd.f32 %v1507, %v1590
        %v1592 = vpop.f32.mrb[0].mxu0
        %v1593 = vpop.f32.mrb[0].mxu0
        %v1594 = vpop.f32.mrb[0].mxu0
        %1595 = vdwg.mxu0
        %1596 = vst [vmem:[%s408] sm:$0xff] %v1591
        %v1597 = vmul.f32 %v1591, 0.5
        %v1598 = vmul.f32 %v1597, 1.442695
        %v1599 = vpow.pop %v1598
        %v1600 = vld [vmem:[%s404] sm:$0xff]
        %v1601 = vmul.f32 %v1599, %v1600
        %v1602 = vadd.f32 %v1591, %v1601
        %1603 = vst [vmem:[%s412] sm:$0xff] %v1602
        %v1604 = vpack.c.bf16 %v1602, %v1602
        %s1605 = scalar_lea.vmem [#allocation5], 320
        %v1606 = vld [vmem:[%s1605] sm:$0xf]
        %v1607 = vld [vmem:[%s1605 + $0x4] sm:$0xf]
        %v1608 = vld [vmem:[%s1605 + $0x8] sm:$0xf]
        %v1609 = vld [vmem:[%s1605 + $0xc] sm:$0xf]
        %v1610 = vld [vmem:[%s1605 + $0x10] sm:$0xf]
        %v1611 = vld [vmem:[%s1605 + $0x14] sm:$0xf]
        %v1612 = vld [vmem:[%s1605 + $0x18] sm:$0xf]
        %v1613 = vld [vmem:[%s1605 + $0x1c] sm:$0xf]
        %v1614 = vld [vmem:[%s1605 + $0x20] sm:$0xf]
        %v1615 = vld [vmem:[%s1605 + $0x24] sm:$0xf]
        %v1616 = vld [vmem:[%s1605 + $0x28] sm:$0xf]
        %v1617 = vld [vmem:[%s1605 + $0x2c] sm:$0xf]
        %v1618 = vld [vmem:[%s1605 + $0x30] sm:$0xf]
        %v1619 = vld [vmem:[%s1605 + $0x34] sm:$0xf]
        %v1620 = vld [vmem:[%s1605 + $0x38] sm:$0xf]
        %v1621 = vld [vmem:[%s1605 + $0x3c] sm:$0xf]
        %v1622 = vlaneseq
        %v1623 = vshrl.u32 %v1622, 7
        %v1624 = vsub.s32 6, %v1623
        %v1625 = vrot.slane %v414, %v1624
        %v1642 = vunpack.c.l.b16 %v1606
        %v1643 = vunpack.c.l.b16 %v1607
        %v1644 = vunpack.c.l.b16 %v1608
        %v1645 = vunpack.c.l.b16 %v1609
        %v1646 = vunpack.c.l.b16 %v1610
        %v1647 = vunpack.c.l.b16 %v1611
        %v1648 = vunpack.c.l.b16 %v1612
        %v1649 = vunpack.c.l.b16 %v1613
        %v1650 = vunpack.c.l.b16 %v1614
        %v1651 = vunpack.c.l.b16 %v1615
        %v1652 = vunpack.c.l.b16 %v1616
        %v1653 = vunpack.c.l.b16 %v1617
        %v1654 = vunpack.c.l.b16 %v1618
        %v1655 = vunpack.c.l.b16 %v1619
        %v1656 = vunpack.c.l.b16 %v1620
        %v1657 = vunpack.c.l.b16 %v1621
        %v1658 = vpack.c.b16 %v1643, %v1642
        %v1659 = vpack.c.b16 %v1645, %v1644
        %v1660 = vpack.c.b16 %v1647, %v1646
        %v1661 = vpack.c.b16 %v1649, %v1648
        %v1662 = vpack.c.b16 %v1651, %v1650
        %v1663 = vpack.c.b16 %v1653, %v1652
        %v1664 = vpack.c.b16 %v1655, %v1654
        %v1665 = vpack.c.b16 %v1657, %v1656
        %1674 = vmatprep.subr.bf16.mxu0 0
        %1675 = vmatpush1.bf16.msra.mxu0 %v1658
        %1676 = vmatprep.subr.bf16.mxu0 0
        %1677 = vmatpush1.bf16.msra.mxu0 %v1659
        %1678 = vmatprep.subr.bf16.mxu0 0
        %1679 = vmatpush1.bf16.msra.mxu0 %v1660
        %1680 = vmatprep.subr.bf16.mxu0 0
        %1681 = vmatpush1.bf16.msra.mxu0 %v1661
        %1682 = vmatprep.subr.bf16.mxu0 0
        %1683 = vmatpush1.bf16.msra.mxu0 %v1662
        %1684 = vmatprep.subr.bf16.mxu0 0
        %1685 = vmatpush1.bf16.msra.mxu0 %v1663
        %1686 = vmatprep.subr.bf16.mxu0 0
        %1687 = vmatpush1.bf16.msra.mxu0 %v1664
        %1688 = vmatprep.subr.bf16.mxu0 0
        %1689 = vmatpush1.bf16.msra.mxu0 %v1665
        %1690 = vmatprep.subr.bf16.mxu0 0
        %1691 = vmatpush1.bf16.msra.mxu0 0
        %1692 = vmatprep.subr.bf16.mxu0 0
        %1693 = vmatpush1.bf16.msra.mxu0 0
        %1694 = vmatprep.subr.bf16.mxu0 0
        %1695 = vmatpush1.bf16.msra.mxu0 0
        %1696 = vmatprep.subr.bf16.mxu0 0
        %1697 = vmatpush1.bf16.msra.mxu0 0
        %1698 = vmatprep.subr.bf16.mxu0 0
        %1699 = vmatpush1.bf16.msra.mxu0 0
        %1700 = vmatprep.subr.bf16.mxu0 0
        %1701 = vmatpush1.bf16.msra.mxu0 0
        %1702 = vmatprep.subr.bf16.mxu0 0
        %1703 = vmatpush1.bf16.msra.mxu0 0
        %1704 = vmatprep.subr.bf16.mxu0 0
        %1705 = vmatpush1.bf16.msra.mxu0 0
        %1706 = vmatprep.mubr.bf16.mxu0 0
        %1707 = vmatmul.mubr.bf16.gmra.mrb[0].mxu0 %v1604
        %v1708 = vpop.f32.mrb[0].mxu0
        %v1709 = vadd.f32 %v1625, %v1708
        %v1710 = vpop.f32.mrb[0].mxu0
        %v1711 = vpop.f32.mrb[0].mxu0
        %v1712 = vpop.f32.mrb[0].mxu0
        %1713 = vdwg.mxu0
        %v1714 = vmax.f32 %v1709, 0.0
        %v1715 = vpack.c.bf16 %v1714, %v1714
        %s1716 = scalar_lea.vmem [#allocation5], 384
        %v1717 = vld [vmem:[%s1716] sm:$0xf]
        %v1718 = vld [vmem:[%s1716 + $0x4] sm:$0xf]
        %v1719 = vld [vmem:[%s1716 + $0x8] sm:$0xf]
        %v1720 = vld [vmem:[%s1716 + $0xc] sm:$0xf]
        %v1721 = vld [vmem:[%s1716 + $0x10] sm:$0xf]
        %v1722 = vld [vmem:[%s1716 + $0x14] sm:$0xf]
        %v1723 = vld [vmem:[%s1716 + $0x18] sm:$0xf]
        %v1724 = vld [vmem:[%s1716 + $0x1c] sm:$0xf]
        %v1725 = vld [vmem:[%s1716 + $0x20] sm:$0xf]
        %v1726 = vld [vmem:[%s1716 + $0x24] sm:$0xf]
        %v1727 = vld [vmem:[%s1716 + $0x28] sm:$0xf]
        %v1728 = vld [vmem:[%s1716 + $0x2c] sm:$0xf]
        %v1729 = vld [vmem:[%s1716 + $0x30] sm:$0xf]
        %v1730 = vld [vmem:[%s1716 + $0x34] sm:$0xf]
        %v1731 = vld [vmem:[%s1716 + $0x38] sm:$0xf]
        %v1732 = vld [vmem:[%s1716 + $0x3c] sm:$0xf]
        %v1733 = vlaneseq
        %v1734 = vshrl.u32 %v1733, 7
        %v1735 = vsub.s32 7, %v1734
        %v1736 = vrot.slane %v414, %v1735
        %v1753 = vunpack.c.l.b16 %v1717
        %v1754 = vunpack.c.l.b16 %v1718
        %v1755 = vunpack.c.l.b16 %v1719
        %v1756 = vunpack.c.l.b16 %v1720
        %v1757 = vunpack.c.l.b16 %v1721
        %v1758 = vunpack.c.l.b16 %v1722
        %v1759 = vunpack.c.l.b16 %v1723
        %v1760 = vunpack.c.l.b16 %v1724
        %v1761 = vunpack.c.l.b16 %v1725
        %v1762 = vunpack.c.l.b16 %v1726
        %v1763 = vunpack.c.l.b16 %v1727
        %v1764 = vunpack.c.l.b16 %v1728
        %v1765 = vunpack.c.l.b16 %v1729
        %v1766 = vunpack.c.l.b16 %v1730
        %v1767 = vunpack.c.l.b16 %v1731
        %v1768 = vunpack.c.l.b16 %v1732
        %v1769 = vpack.c.b16 %v1754, %v1753
        %v1770 = vpack.c.b16 %v1756, %v1755
        %v1771 = vpack.c.b16 %v1758, %v1757
        %v1772 = vpack.c.b16 %v1760, %v1759
        %v1773 = vpack.c.b16 %v1762, %v1761
        %v1774 = vpack.c.b16 %v1764, %v1763
        %v1775 = vpack.c.b16 %v1766, %v1765
        %v1776 = vpack.c.b16 %v1768, %v1767
        %1785 = vmatprep.subr.bf16.mxu0 0
        %1786 = vmatpush1.bf16.msra.mxu0 %v1769
        %1787 = vmatprep.subr.bf16.mxu0 0
        %1788 = vmatpush1.bf16.msra.mxu0 %v1770
        %1789 = vmatprep.subr.bf16.mxu0 0
        %1790 = vmatpush1.bf16.msra.mxu0 %v1771
        %1791 = vmatprep.subr.bf16.mxu0 0
        %1792 = vmatpush1.bf16.msra.mxu0 %v1772
        %1793 = vmatprep.subr.bf16.mxu0 0
        %1794 = vmatpush1.bf16.msra.mxu0 %v1773
        %1795 = vmatprep.subr.bf16.mxu0 0
        %1796 = vmatpush1.bf16.msra.mxu0 %v1774
        %1797 = vmatprep.subr.bf16.mxu0 0
        %1798 = vmatpush1.bf16.msra.mxu0 %v1775
        %1799 = vmatprep.subr.bf16.mxu0 0
        %1800 = vmatpush1.bf16.msra.mxu0 %v1776
        %1801 = vmatprep.subr.bf16.mxu0 0
        %1802 = vmatpush1.bf16.msra.mxu0 0
        %1803 = vmatprep.subr.bf16.mxu0 0
        %1804 = vmatpush1.bf16.msra.mxu0 0
        %1805 = vmatprep.subr.bf16.mxu0 0
        %1806 = vmatpush1.bf16.msra.mxu0 0
        %1807 = vmatprep.subr.bf16.mxu0 0
        %1808 = vmatpush1.bf16.msra.mxu0 0
        %1809 = vmatprep.subr.bf16.mxu0 0
        %1810 = vmatpush1.bf16.msra.mxu0 0
        %1811 = vmatprep.subr.bf16.mxu0 0
        %1812 = vmatpush1.bf16.msra.mxu0 0
        %1813 = vmatprep.subr.bf16.mxu0 0
        %1814 = vmatpush1.bf16.msra.mxu0 0
        %1815 = vmatprep.subr.bf16.mxu0 0
        %1816 = vmatpush1.bf16.msra.mxu0 0
        %1817 = vmatprep.mubr.bf16.mxu0 0
        %1818 = vmatmul.mubr.bf16.gmra.mrb[0].mxu0 %v1715
        %v1819 = vpop.f32.mrb[0].mxu0
        %v1820 = vadd.f32 %v1736, %v1819
        %v1821 = vpop.f32.mrb[0].mxu0
        %v1822 = vpop.f32.mrb[0].mxu0
        %v1823 = vpop.f32.mrb[0].mxu0
        %1824 = vdwg.mxu0
        %v1825 = vmax.f32 %v1820, 0.0
        %v1826 = vpack.c.bf16 %v1825, %v1825
        %s1827 = scalar_lea.vmem [#allocation5], 448
        %v1828 = vld [vmem:[%s1827] sm:$0xf]
        %v1829 = vld [vmem:[%s1827 + $0x4] sm:$0xf]
        %v1830 = vld [vmem:[%s1827 + $0x8] sm:$0xf]
        %v1831 = vld [vmem:[%s1827 + $0xc] sm:$0xf]
        %v1832 = vld [vmem:[%s1827 + $0x10] sm:$0xf]
        %v1833 = vld [vmem:[%s1827 + $0x14] sm:$0xf]
        %v1834 = vld [vmem:[%s1827 + $0x18] sm:$0xf]
        %v1835 = vld [vmem:[%s1827 + $0x1c] sm:$0xf]
        %v1836 = vld [vmem:[%s1827 + $0x20] sm:$0xf]
        %v1837 = vld [vmem:[%s1827 + $0x24] sm:$0xf]
        %v1838 = vld [vmem:[%s1827 + $0x28] sm:$0xf]
        %v1839 = vld [vmem:[%s1827 + $0x2c] sm:$0xf]
        %v1840 = vld [vmem:[%s1827 + $0x30] sm:$0xf]
        %v1841 = vld [vmem:[%s1827 + $0x34] sm:$0xf]
        %v1842 = vld [vmem:[%s1827 + $0x38] sm:$0xf]
        %v1843 = vld [vmem:[%s1827 + $0x3c] sm:$0xf]
        %v1844 = vlaneseq
        %v1845 = vshrl.u32 %v1844, 7
        %v1846 = vsub.s32 0, %v1845
        %v1847 = vrot.slane %v415, %v1846
        %v1864 = vunpack.c.l.b16 %v1828
        %v1865 = vunpack.c.l.b16 %v1829
        %v1866 = vunpack.c.l.b16 %v1830
        %v1867 = vunpack.c.l.b16 %v1831
        %v1868 = vunpack.c.l.b16 %v1832
        %v1869 = vunpack.c.l.b16 %v1833
        %v1870 = vunpack.c.l.b16 %v1834
        %v1871 = vunpack.c.l.b16 %v1835
        %v1872 = vunpack.c.l.b16 %v1836
        %v1873 = vunpack.c.l.b16 %v1837
        %v1874 = vunpack.c.l.b16 %v1838
        %v1875 = vunpack.c.l.b16 %v1839
        %v1876 = vunpack.c.l.b16 %v1840
        %v1877 = vunpack.c.l.b16 %v1841
        %v1878 = vunpack.c.l.b16 %v1842
        %v1879 = vunpack.c.l.b16 %v1843
        %v1880 = vpack.c.b16 %v1865, %v1864
        %v1881 = vpack.c.b16 %v1867, %v1866
        %v1882 = vpack.c.b16 %v1869, %v1868
        %v1883 = vpack.c.b16 %v1871, %v1870
        %v1884 = vpack.c.b16 %v1873, %v1872
        %v1885 = vpack.c.b16 %v1875, %v1874
        %v1886 = vpack.c.b16 %v1877, %v1876
        %v1887 = vpack.c.b16 %v1879, %v1878
        %1896 = vmatprep.subr.bf16.mxu0 0
        %1897 = vmatpush1.bf16.msra.mxu0 %v1880
        %1898 = vmatprep.subr.bf16.mxu0 0
        %1899 = vmatpush1.bf16.msra.mxu0 %v1881
        %1900 = vmatprep.subr.bf16.mxu0 0
        %1901 = vmatpush1.bf16.msra.mxu0 %v1882
        %1902 = vmatprep.subr.bf16.mxu0 0
        %1903 = vmatpush1.bf16.msra.mxu0 %v1883
        %1904 = vmatprep.subr.bf16.mxu0 0
        %1905 = vmatpush1.bf16.msra.mxu0 %v1884
        %1906 = vmatprep.subr.bf16.mxu0 0
        %1907 = vmatpush1.bf16.msra.mxu0 %v1885
        %1908 = vmatprep.subr.bf16.mxu0 0
        %1909 = vmatpush1.bf16.msra.mxu0 %v1886
        %1910 = vmatprep.subr.bf16.mxu0 0
        %1911 = vmatpush1.bf16.msra.mxu0 %v1887
        %1912 = vmatprep.subr.bf16.mxu0 0
        %1913 = vmatpush1.bf16.msra.mxu0 0
        %1914 = vmatprep.subr.bf16.mxu0 0
        %1915 = vmatpush1.bf16.msra.mxu0 0
        %1916 = vmatprep.subr.bf16.mxu0 0
        %1917 = vmatpush1.bf16.msra.mxu0 0
        %1918 = vmatprep.subr.bf16.mxu0 0
        %1919 = vmatpush1.bf16.msra.mxu0 0
        %1920 = vmatprep.subr.bf16.mxu0 0
        %1921 = vmatpush1.bf16.msra.mxu0 0
        %1922 = vmatprep.subr.bf16.mxu0 0
        %1923 = vmatpush1.bf16.msra.mxu0 0
        %1924 = vmatprep.subr.bf16.mxu0 0
        %1925 = vmatpush1.bf16.msra.mxu0 0
        %1926 = vmatprep.subr.bf16.mxu0 0
        %1927 = vmatpush1.bf16.msra.mxu0 0
        %1928 = vmatprep.mubr.bf16.mxu0 0
        %1929 = vmatmul.mubr.bf16.gmra.mrb[0].mxu0 %v1826
        %v1930 = vpop.f32.mrb[0].mxu0
        %v1931 = vadd.f32 %v1847, %v1930
        %v1932 = vpop.f32.mrb[0].mxu0
        %v1933 = vpop.f32.mrb[0].mxu0
        %v1934 = vpop.f32.mrb[0].mxu0
        %1935 = vdwg.mxu0
        %v1936 = vmax.f32 %v1931, 0.0
        %v1937 = vpack.c.bf16 %v1936, %v1936
        %s1938 = scalar_lea.vmem [#allocation5], 512
        %v1939 = vld [vmem:[%s1938] sm:$0xf]
        %v1940 = vld [vmem:[%s1938 + $0x4] sm:$0xf]
        %v1941 = vld [vmem:[%s1938 + $0x8] sm:$0xf]
        %v1942 = vld [vmem:[%s1938 + $0xc] sm:$0xf]
        %v1943 = vld [vmem:[%s1938 + $0x10] sm:$0xf]
        %v1944 = vld [vmem:[%s1938 + $0x14] sm:$0xf]
        %v1945 = vld [vmem:[%s1938 + $0x18] sm:$0xf]
        %v1946 = vld [vmem:[%s1938 + $0x1c] sm:$0xf]
        %v1947 = vld [vmem:[%s1938 + $0x20] sm:$0xf]
        %v1948 = vld [vmem:[%s1938 + $0x24] sm:$0xf]
        %v1949 = vld [vmem:[%s1938 + $0x28] sm:$0xf]
        %v1950 = vld [vmem:[%s1938 + $0x2c] sm:$0xf]
        %v1951 = vld [vmem:[%s1938 + $0x30] sm:$0xf]
        %v1952 = vld [vmem:[%s1938 + $0x34] sm:$0xf]
        %v1953 = vld [vmem:[%s1938 + $0x38] sm:$0xf]
        %v1954 = vld [vmem:[%s1938 + $0x3c] sm:$0xf]
        %v1955 = vlaneseq
        %v1956 = vshrl.u32 %v1955, 7
        %v1957 = vsub.s32 1, %v1956
        %v1958 = vrot.slane %v415, %v1957
        %v1975 = vunpack.c.l.b16 %v1939
        %v1976 = vunpack.c.l.b16 %v1940
        %v1977 = vunpack.c.l.b16 %v1941
        %v1978 = vunpack.c.l.b16 %v1942
        %v1979 = vunpack.c.l.b16 %v1943
        %v1980 = vunpack.c.l.b16 %v1944
        %v1981 = vunpack.c.l.b16 %v1945
        %v1982 = vunpack.c.l.b16 %v1946
        %v1983 = vunpack.c.l.b16 %v1947
        %v1984 = vunpack.c.l.b16 %v1948
        %v1985 = vunpack.c.l.b16 %v1949
        %v1986 = vunpack.c.l.b16 %v1950
        %v1987 = vunpack.c.l.b16 %v1951
        %v1988 = vunpack.c.l.b16 %v1952
        %v1989 = vunpack.c.l.b16 %v1953
        %v1990 = vunpack.c.l.b16 %v1954
        %v1991 = vpack.c.b16 %v1976, %v1975
        %v1992 = vpack.c.b16 %v1978, %v1977
        %v1993 = vpack.c.b16 %v1980, %v1979
        %v1994 = vpack.c.b16 %v1982, %v1981
        %v1995 = vpack.c.b16 %v1984, %v1983
        %v1996 = vpack.c.b16 %v1986, %v1985
        %v1997 = vpack.c.b16 %v1988, %v1987
        %v1998 = vpack.c.b16 %v1990, %v1989
        %2007 = vmatprep.subr.bf16.mxu0 0
        %2008 = vmatpush1.bf16.msra.mxu0 %v1991
        %2009 = vmatprep.subr.bf16.mxu0 0
        %2010 = vmatpush1.bf16.msra.mxu0 %v1992
        %2011 = vmatprep.subr.bf16.mxu0 0
        %2012 = vmatpush1.bf16.msra.mxu0 %v1993
        %2013 = vmatprep.subr.bf16.mxu0 0
        %2014 = vmatpush1.bf16.msra.mxu0 %v1994
        %2015 = vmatprep.subr.bf16.mxu0 0
        %2016 = vmatpush1.bf16.msra.mxu0 %v1995
        %2017 = vmatprep.subr.bf16.mxu0 0
        %2018 = vmatpush1.bf16.msra.mxu0 %v1996
        %2019 = vmatprep.subr.bf16.mxu0 0
        %2020 = vmatpush1.bf16.msra.mxu0 %v1997
        %2021 = vmatprep.subr.bf16.mxu0 0
        %2022 = vmatpush1.bf16.msra.mxu0 %v1998
        %2023 = vmatprep.subr.bf16.mxu0 0
        %2024 = vmatpush1.bf16.msra.mxu0 0
        %2025 = vmatprep.subr.bf16.mxu0 0
        %2026 = vmatpush1.bf16.msra.mxu0 0
        %2027 = vmatprep.subr.bf16.mxu0 0
        %2028 = vmatpush1.bf16.msra.mxu0 0
        %2029 = vmatprep.subr.bf16.mxu0 0
        %2030 = vmatpush1.bf16.msra.mxu0 0
        %2031 = vmatprep.subr.bf16.mxu0 0
        %2032 = vmatpush1.bf16.msra.mxu0 0
        %2033 = vmatprep.subr.bf16.mxu0 0
        %2034 = vmatpush1.bf16.msra.mxu0 0
        %2035 = vmatprep.subr.bf16.mxu0 0
        %2036 = vmatpush1.bf16.msra.mxu0 0
        %2037 = vmatprep.subr.bf16.mxu0 0
        %2038 = vmatpush1.bf16.msra.mxu0 0
        %2039 = vmatprep.mubr.bf16.mxu0 0
        %2040 = vmatmul.mubr.bf16.gmra.mrb[0].mxu0 %v1937
        %v2041 = vpop.f32.mrb[0].mxu0
        %v2042 = vadd.f32 %v1958, %v2041
        %v2043 = vpop.f32.mrb[0].mxu0
        %v2044 = vpop.f32.mrb[0].mxu0
        %v2045 = vpop.f32.mrb[0].mxu0
        %2046 = vdwg.mxu0
        %v2047 = vmax.f32 %v2042, 0.0
        %v2048 = vpack.c.bf16 %v2047, %v2047
        %s2049 = scalar_lea.vmem [#allocation5], 576
        %v2050 = vld [vmem:[%s2049] sm:$0xf]
        %v2051 = vld [vmem:[%s2049 + $0x4] sm:$0xf]
        %v2052 = vld [vmem:[%s2049 + $0x8] sm:$0xf]
        %v2053 = vld [vmem:[%s2049 + $0xc] sm:$0xf]
        %v2054 = vld [vmem:[%s2049 + $0x10] sm:$0xf]
        %v2055 = vld [vmem:[%s2049 + $0x14] sm:$0xf]
        %v2056 = vld [vmem:[%s2049 + $0x18] sm:$0xf]
        %v2057 = vld [vmem:[%s2049 + $0x1c] sm:$0xf]
        %v2058 = vld [vmem:[%s2049 + $0x20] sm:$0xf]
        %v2059 = vld [vmem:[%s2049 + $0x24] sm:$0xf]
        %v2060 = vld [vmem:[%s2049 + $0x28] sm:$0xf]
        %v2061 = vld [vmem:[%s2049 + $0x2c] sm:$0xf]
        %v2062 = vld [vmem:[%s2049 + $0x30] sm:$0xf]
        %v2063 = vld [vmem:[%s2049 + $0x34] sm:$0xf]
        %v2064 = vld [vmem:[%s2049 + $0x38] sm:$0xf]
        %v2065 = vld [vmem:[%s2049 + $0x3c] sm:$0xf]
        %v2066 = vlaneseq
        %v2067 = vshrl.u32 %v2066, 7
        %v2068 = vsub.s32 2, %v2067
        %v2069 = vrot.slane %v415, %v2068
        %v2086 = vunpack.c.l.b16 %v2050
        %v2087 = vunpack.c.l.b16 %v2051
        %v2088 = vunpack.c.l.b16 %v2052
        %v2089 = vunpack.c.l.b16 %v2053
        %v2090 = vunpack.c.l.b16 %v2054
        %v2091 = vunpack.c.l.b16 %v2055
        %v2092 = vunpack.c.l.b16 %v2056
        %v2093 = vunpack.c.l.b16 %v2057
        %v2094 = vunpack.c.l.b16 %v2058
        %v2095 = vunpack.c.l.b16 %v2059
        %v2096 = vunpack.c.l.b16 %v2060
        %v2097 = vunpack.c.l.b16 %v2061
        %v2098 = vunpack.c.l.b16 %v2062
        %v2099 = vunpack.c.l.b16 %v2063
        %v2100 = vunpack.c.l.b16 %v2064
        %v2101 = vunpack.c.l.b16 %v2065
        %v2102 = vpack.c.b16 %v2087, %v2086
        %v2103 = vpack.c.b16 %v2089, %v2088
        %v2104 = vpack.c.b16 %v2091, %v2090
        %v2105 = vpack.c.b16 %v2093, %v2092
        %v2106 = vpack.c.b16 %v2095, %v2094
        %v2107 = vpack.c.b16 %v2097, %v2096
        %v2108 = vpack.c.b16 %v2099, %v2098
        %v2109 = vpack.c.b16 %v2101, %v2100
        %2118 = vmatprep.subr.bf16.mxu0 0
        %2119 = vmatpush1.bf16.msra.mxu0 %v2102
        %2120 = vmatprep.subr.bf16.mxu0 0
        %2121 = vmatpush1.bf16.msra.mxu0 %v2103
        %2122 = vmatprep.subr.bf16.mxu0 0
        %2123 = vmatpush1.bf16.msra.mxu0 %v2104
        %2124 = vmatprep.subr.bf16.mxu0 0
        %2125 = vmatpush1.bf16.msra.mxu0 %v2105
        %2126 = vmatprep.subr.bf16.mxu0 0
        %2127 = vmatpush1.bf16.msra.mxu0 %v2106
        %2128 = vmatprep.subr.bf16.mxu0 0
        %2129 = vmatpush1.bf16.msra.mxu0 %v2107
        %2130 = vmatprep.subr.bf16.mxu0 0
        %2131 = vmatpush1.bf16.msra.mxu0 %v2108
        %2132 = vmatprep.subr.bf16.mxu0 0
        %2133 = vmatpush1.bf16.msra.mxu0 %v2109
        %2134 = vmatprep.subr.bf16.mxu0 0
        %2135 = vmatpush1.bf16.msra.mxu0 0
        %2136 = vmatprep.subr.bf16.mxu0 0
        %2137 = vmatpush1.bf16.msra.mxu0 0
        %2138 = vmatprep.subr.bf16.mxu0 0
        %2139 = vmatpush1.bf16.msra.mxu0 0
        %2140 = vmatprep.subr.bf16.mxu0 0
        %2141 = vmatpush1.bf16.msra.mxu0 0
        %2142 = vmatprep.subr.bf16.mxu0 0
        %2143 = vmatpush1.bf16.msra.mxu0 0
        %2144 = vmatprep.subr.bf16.mxu0 0
        %2145 = vmatpush1.bf16.msra.mxu0 0
        %2146 = vmatprep.subr.bf16.mxu0 0
        %2147 = vmatpush1.bf16.msra.mxu0 0
        %2148 = vmatprep.subr.bf16.mxu0 0
        %2149 = vmatpush1.bf16.msra.mxu0 0
        %2150 = vmatprep.mubr.bf16.mxu0 0
        %2151 = vmatmul.mubr.bf16.gmra.mrb[0].mxu0 %v2048
        %v2152 = vpop.f32.mrb[0].mxu0
        %v2153 = vadd.f32 %v2069, %v2152
        %v2154 = vpop.f32.mrb[0].mxu0
        %v2155 = vpop.f32.mrb[0].mxu0
        %v2156 = vpop.f32.mrb[0].mxu0
        %2157 = vdwg.mxu0
        %v2158 = vmax.f32 %v2153, 0.0
        %v2159 = vpack.c.bf16 %v2158, %v2158
        %v2160 = vld [vmem:[#allocation7] sm:$0xff]
        %v2161 = vld [vmem:[#allocation7 + $0x8] sm:$0xff]
        %v2162 = vld [vmem:[#allocation7 + $0x10] sm:$0xff]
        %v2163 = vld [vmem:[#allocation7 + $0x18] sm:$0xf]
        %v2164 = vld [vmem:[#allocation7 + $0x1c] sm:$0xff]
        %v2165 = vld [vmem:[#allocation7 + $0x24] sm:$0xff]
        %v2166 = vld [vmem:[#allocation7 + $0x2c] sm:$0xff]
        %v2167 = vld [vmem:[#allocation7 + $0x34] sm:$0xf]
        %v2168 = vld [vmem:[#allocation7 + $0x38] sm:$0xff]
        %v2169 = vld [vmem:[#allocation7 + $0x40] sm:$0xff]
        %v2170 = vld [vmem:[#allocation7 + $0x48] sm:$0xff]
        %v2171 = vld [vmem:[#allocation7 + $0x50] sm:$0xf]
        %v2172 = vld [vmem:[#allocation7 + $0x54] sm:$0xff]
        %v2173 = vld [vmem:[#allocation7 + $0x5c] sm:$0xff]
        %v2174 = vld [vmem:[#allocation7 + $0x64] sm:$0xff]
        %v2175 = vld [vmem:[#allocation7 + $0x6c] sm:$0xf]
        %v2176 = vld [vmem:[#allocation7 + $0x70] sm:$0xff]
        %v2177 = vld [vmem:[#allocation7 + $0x78] sm:$0xff]
        %v2178 = vld [vmem:[#allocation7 + $0x80] sm:$0xff]
        %v2179 = vld [vmem:[#allocation7 + $0x88] sm:$0xf]
        %v2180 = vld [vmem:[#allocation7 + $0x8c] sm:$0xff]
        %v2181 = vld [vmem:[#allocation7 + $0x94] sm:$0xff]
        %v2182 = vld [vmem:[#allocation7 + $0x9c] sm:$0xff]
        %v2183 = vld [vmem:[#allocation7 + $0xa4] sm:$0xf]
        %v2184 = vld [vmem:[#allocation7 + $0xa8] sm:$0xff]
        %v2185 = vld [vmem:[#allocation7 + $0xb0] sm:$0xff]
        %v2186 = vld [vmem:[#allocation7 + $0xb8] sm:$0xff]
        %v2187 = vld [vmem:[#allocation7 + $0xc0] sm:$0xf]
        %v2188 = vld [vmem:[#allocation7 + $0xc4] sm:$0xff]
        %v2189 = vld [vmem:[#allocation7 + $0xcc] sm:$0xff]
        %v2190 = vld [vmem:[#allocation7 + $0xd4] sm:$0xff]
        %v2191 = vld [vmem:[#allocation7 + $0xdc] sm:$0xf]
        %v2192 = vld [vmem:[#allocation7 + $0xe0] sm:$0xff]
        %v2193 = vld [vmem:[#allocation7 + $0xe8] sm:$0xff]
        %v2194 = vld [vmem:[#allocation7 + $0xf0] sm:$0xff]
        %v2195 = vld [vmem:[#allocation7 + $0xf8] sm:$0xf]
        %v2196 = vld [vmem:[#allocation7 + $0xfc] sm:$0xff]
        %v2197 = vld [vmem:[#allocation7 + $0x104] sm:$0xff]
        %v2198 = vld [vmem:[#allocation7 + $0x10c] sm:$0xff]
        %v2199 = vld [vmem:[#allocation7 + $0x114] sm:$0xf]
        %v2200 = vld [vmem:[#allocation7 + $0x118] sm:$0xff]
        %v2201 = vld [vmem:[#allocation7 + $0x120] sm:$0xff]
        %v2202 = vld [vmem:[#allocation7 + $0x128] sm:$0xff]
        %v2203 = vld [vmem:[#allocation7 + $0x130] sm:$0xf]
        %v2204 = vld [vmem:[#allocation7 + $0x134] sm:$0xff]
        %v2205 = vld [vmem:[#allocation7 + $0x13c] sm:$0xff]
        %v2206 = vld [vmem:[#allocation7 + $0x144] sm:$0xff]
        %v2207 = vld [vmem:[#allocation7 + $0x14c] sm:$0xf]
        %v2208 = vld [vmem:[#allocation7 + $0x150] sm:$0xff]
        %v2209 = vld [vmem:[#allocation7 + $0x158] sm:$0xff]
        %v2210 = vld [vmem:[#allocation7 + $0x160] sm:$0xff]
        %v2211 = vld [vmem:[#allocation7 + $0x168] sm:$0xf]
        %v2212 = vld [vmem:[#allocation7 + $0x16c] sm:$0xff]
        %v2213 = vld [vmem:[#allocation7 + $0x174] sm:$0xff]
        %v2214 = vld [vmem:[#allocation7 + $0x17c] sm:$0xff]
        %v2215 = vld [vmem:[#allocation7 + $0x184] sm:$0xf]
        %v2216 = vld [vmem:[#allocation7 + $0x188] sm:$0xff]
        %v2217 = vld [vmem:[#allocation7 + $0x190] sm:$0xff]
        %v2218 = vld [vmem:[#allocation7 + $0x198] sm:$0xff]
        %v2219 = vld [vmem:[#allocation7 + $0x1a0] sm:$0xf]
        %v2220 = vld [vmem:[#allocation7 + $0x1a4] sm:$0xff]
        %v2221 = vld [vmem:[#allocation7 + $0x1ac] sm:$0xff]
        %v2222 = vld [vmem:[#allocation7 + $0x1b4] sm:$0xff]
        %v2223 = vld [vmem:[#allocation7 + $0x1bc] sm:$0xf]
        %v2224 = vld [vmem:[%s6] sm:$0xff]
        %v2226 = vlaneseq
        %v2227 = vshrl.u32 %v2226, 7
        %v2228 = vsub.s32 0, %v2227
        %v2229 = vrot.slane %v2224, %v2228
        %v2230 = vlaneseq
        %v2231 = vshrl.u32 %v2230, 7
        %v2232 = vsub.s32 1, %v2231
        %v2233 = vrot.slane %v2224, %v2232
        %v2234 = vlaneseq
        %v2235 = vshrl.u32 %v2234, 7
        %v2236 = vsub.s32 2, %v2235
        %v2237 = vrot.slane %v2224, %v2236
        %v2238 = vlaneseq
        %v2239 = vshrl.u32 %v2238, 7
        %v2240 = vsub.s32 3, %v2239
        %v2241 = vrot.slane %v2224, %v2240
        %v2242 = vlaneseq
        %v2243 = vshrl.u32 %v2242, 7
        %v2244 = vsub.s32 4, %v2243
        %v2245 = vrot.slane %v2224, %v2244
        %v2246 = vlaneseq
        %v2247 = vshrl.u32 %v2246, 7
        %v2248 = vsub.s32 5, %v2247
        %v2249 = vrot.slane %v2224, %v2248
        %v2250 = vlaneseq
        %v2251 = vshrl.u32 %v2250, 7
        %v2252 = vsub.s32 6, %v2251
        %v2253 = vrot.slane %v2224, %v2252
        %v2325 = vunpack.c.l.b16 %v2160
        %v2326 = vunpack.c.h.b16 %v2160
        %v2327 = vunpack.c.l.b16 %v2161
        %v2328 = vunpack.c.h.b16 %v2161
        %v2329 = vunpack.c.l.b16 %v2162
        %v2330 = vunpack.c.h.b16 %v2162
        %v2331 = vunpack.c.l.b16 %v2163
        %v2332 = vunpack.c.l.b16 %v2164
        %v2333 = vunpack.c.h.b16 %v2164
        %v2334 = vunpack.c.l.b16 %v2165
        %v2335 = vunpack.c.h.b16 %v2165
        %v2336 = vunpack.c.l.b16 %v2166
        %v2337 = vunpack.c.h.b16 %v2166
        %v2338 = vunpack.c.l.b16 %v2167
        %v2339 = vunpack.c.l.b16 %v2168
        %v2340 = vunpack.c.h.b16 %v2168
        %v2341 = vunpack.c.l.b16 %v2169
        %v2342 = vunpack.c.h.b16 %v2169
        %v2343 = vunpack.c.l.b16 %v2170
        %v2344 = vunpack.c.h.b16 %v2170
        %v2345 = vunpack.c.l.b16 %v2171
        %v2346 = vunpack.c.l.b16 %v2172
        %v2347 = vunpack.c.h.b16 %v2172
        %v2348 = vunpack.c.l.b16 %v2173
        %v2349 = vunpack.c.h.b16 %v2173
        %v2350 = vunpack.c.l.b16 %v2174
        %v2351 = vunpack.c.h.b16 %v2174
        %v2352 = vunpack.c.l.b16 %v2175
        %v2353 = vunpack.c.l.b16 %v2176
        %v2354 = vunpack.c.h.b16 %v2176
        %v2355 = vunpack.c.l.b16 %v2177
        %v2356 = vunpack.c.h.b16 %v2177
        %v2357 = vunpack.c.l.b16 %v2178
        %v2358 = vunpack.c.h.b16 %v2178
        %v2359 = vunpack.c.l.b16 %v2179
        %v2360 = vunpack.c.l.b16 %v2180
        %v2361 = vunpack.c.h.b16 %v2180
        %v2362 = vunpack.c.l.b16 %v2181
        %v2363 = vunpack.c.h.b16 %v2181
        %v2364 = vunpack.c.l.b16 %v2182
        %v2365 = vunpack.c.h.b16 %v2182
        %v2366 = vunpack.c.l.b16 %v2183
        %v2367 = vunpack.c.l.b16 %v2184
        %v2368 = vunpack.c.h.b16 %v2184
        %v2369 = vunpack.c.l.b16 %v2185
        %v2370 = vunpack.c.h.b16 %v2185
        %v2371 = vunpack.c.l.b16 %v2186
        %v2372 = vunpack.c.h.b16 %v2186
        %v2373 = vunpack.c.l.b16 %v2187
        %v2374 = vunpack.c.l.b16 %v2188
        %v2375 = vunpack.c.h.b16 %v2188
        %v2376 = vunpack.c.l.b16 %v2189
        %v2377 = vunpack.c.h.b16 %v2189
        %v2378 = vunpack.c.l.b16 %v2190
        %v2379 = vunpack.c.h.b16 %v2190
        %v2380 = vunpack.c.l.b16 %v2191
        %v2381 = vunpack.c.l.b16 %v2192
        %v2382 = vunpack.c.h.b16 %v2192
        %v2383 = vunpack.c.l.b16 %v2193
        %v2384 = vunpack.c.h.b16 %v2193
        %v2385 = vunpack.c.l.b16 %v2194
        %v2386 = vunpack.c.h.b16 %v2194
        %v2387 = vunpack.c.l.b16 %v2195
        %v2388 = vunpack.c.l.b16 %v2196
        %v2389 = vunpack.c.h.b16 %v2196
        %v2390 = vunpack.c.l.b16 %v2197
        %v2391 = vunpack.c.h.b16 %v2197
        %v2392 = vunpack.c.l.b16 %v2198
        %v2393 = vunpack.c.h.b16 %v2198
        %v2394 = vunpack.c.l.b16 %v2199
        %v2395 = vunpack.c.l.b16 %v2200
        %v2396 = vunpack.c.h.b16 %v2200
        %v2397 = vunpack.c.l.b16 %v2201
        %v2398 = vunpack.c.h.b16 %v2201
        %v2399 = vunpack.c.l.b16 %v2202
        %v2400 = vunpack.c.h.b16 %v2202
        %v2401 = vunpack.c.l.b16 %v2203
        %v2402 = vunpack.c.l.b16 %v2204
        %v2403 = vunpack.c.h.b16 %v2204
        %v2404 = vunpack.c.l.b16 %v2205
        %v2405 = vunpack.c.h.b16 %v2205
        %v2406 = vunpack.c.l.b16 %v2206
        %v2407 = vunpack.c.h.b16 %v2206
        %v2408 = vunpack.c.l.b16 %v2207
        %v2409 = vunpack.c.l.b16 %v2208
        %v2410 = vunpack.c.h.b16 %v2208
        %v2411 = vunpack.c.l.b16 %v2209
        %v2412 = vunpack.c.h.b16 %v2209
        %v2413 = vunpack.c.l.b16 %v2210
        %v2414 = vunpack.c.h.b16 %v2210
        %v2415 = vunpack.c.l.b16 %v2211
        %v2416 = vunpack.c.l.b16 %v2212
        %v2417 = vunpack.c.h.b16 %v2212
        %v2418 = vunpack.c.l.b16 %v2213
        %v2419 = vunpack.c.h.b16 %v2213
        %v2420 = vunpack.c.l.b16 %v2214
        %v2421 = vunpack.c.h.b16 %v2214
        %v2422 = vunpack.c.l.b16 %v2215
        %v2423 = vunpack.c.l.b16 %v2216
        %v2424 = vunpack.c.h.b16 %v2216
        %v2425 = vunpack.c.l.b16 %v2217
        %v2426 = vunpack.c.h.b16 %v2217
        %v2427 = vunpack.c.l.b16 %v2218
        %v2428 = vunpack.c.h.b16 %v2218
        %v2429 = vunpack.c.l.b16 %v2219
        %v2430 = vunpack.c.l.b16 %v2220
        %v2431 = vunpack.c.h.b16 %v2220
        %v2432 = vunpack.c.l.b16 %v2221
        %v2433 = vunpack.c.h.b16 %v2221
        %v2434 = vunpack.c.l.b16 %v2222
        %v2435 = vunpack.c.h.b16 %v2222
        %v2436 = vunpack.c.l.b16 %v2223
        %v2437 = vpack.c.b16 %v2332, %v2325
        %v2438 = vpack.c.b16 %v2333, %v2326
        %v2439 = vpack.c.b16 %v2334, %v2327
        %v2440 = vpack.c.b16 %v2335, %v2328
        %v2441 = vpack.c.b16 %v2336, %v2329
        %v2442 = vpack.c.b16 %v2337, %v2330
        %v2443 = vpack.c.b16 %v2338, %v2331
        %v2444 = vpack.c.b16 %v2346, %v2339
        %v2445 = vpack.c.b16 %v2347, %v2340
        %v2446 = vpack.c.b16 %v2348, %v2341
        %v2447 = vpack.c.b16 %v2349, %v2342
        %v2448 = vpack.c.b16 %v2350, %v2343
        %v2449 = vpack.c.b16 %v2351, %v2344
        %v2450 = vpack.c.b16 %v2352, %v2345
        %v2451 = vpack.c.b16 %v2360, %v2353
        %v2452 = vpack.c.b16 %v2361, %v2354
        %v2453 = vpack.c.b16 %v2362, %v2355
        %v2454 = vpack.c.b16 %v2363, %v2356
        %v2455 = vpack.c.b16 %v2364, %v2357
        %v2456 = vpack.c.b16 %v2365, %v2358
        %v2457 = vpack.c.b16 %v2366, %v2359
        %v2458 = vpack.c.b16 %v2374, %v2367
        %v2459 = vpack.c.b16 %v2375, %v2368
        %v2460 = vpack.c.b16 %v2376, %v2369
        %v2461 = vpack.c.b16 %v2377, %v2370
        %v2462 = vpack.c.b16 %v2378, %v2371
        %v2463 = vpack.c.b16 %v2379, %v2372
        %v2464 = vpack.c.b16 %v2380, %v2373
        %v2465 = vpack.c.b16 %v2388, %v2381
        %v2466 = vpack.c.b16 %v2389, %v2382
        %v2467 = vpack.c.b16 %v2390, %v2383
        %v2468 = vpack.c.b16 %v2391, %v2384
        %v2469 = vpack.c.b16 %v2392, %v2385
        %v2470 = vpack.c.b16 %v2393, %v2386
        %v2471 = vpack.c.b16 %v2394, %v2387
        %v2472 = vpack.c.b16 %v2402, %v2395
        %v2473 = vpack.c.b16 %v2403, %v2396
        %v2474 = vpack.c.b16 %v2404, %v2397
        %v2475 = vpack.c.b16 %v2405, %v2398
        %v2476 = vpack.c.b16 %v2406, %v2399
        %v2477 = vpack.c.b16 %v2407, %v2400
        %v2478 = vpack.c.b16 %v2408, %v2401
        %v2479 = vpack.c.b16 %v2416, %v2409
        %v2480 = vpack.c.b16 %v2417, %v2410
        %v2481 = vpack.c.b16 %v2418, %v2411
        %v2482 = vpack.c.b16 %v2419, %v2412
        %v2483 = vpack.c.b16 %v2420, %v2413
        %v2484 = vpack.c.b16 %v2421, %v2414
        %v2485 = vpack.c.b16 %v2422, %v2415
        %v2486 = vpack.c.b16 %v2430, %v2423
        %v2487 = vpack.c.b16 %v2431, %v2424
        %v2488 = vpack.c.b16 %v2432, %v2425
        %v2489 = vpack.c.b16 %v2433, %v2426
        %v2490 = vpack.c.b16 %v2434, %v2427
        %v2491 = vpack.c.b16 %v2435, %v2428
        %v2492 = vpack.c.b16 %v2436, %v2429
        %2549 = vmatprep.subr.bf16.mxu0 %v2438
        %2550 = vmatpush1.bf16.msra.mxu0 %v2437
        %2551 = vmatprep.subr.bf16.mxu0 %v2445
        %2552 = vmatpush1.bf16.msra.mxu0 %v2444
        %2553 = vmatprep.subr.bf16.mxu0 %v2452
        %2554 = vmatpush1.bf16.msra.mxu0 %v2451
        %2555 = vmatprep.subr.bf16.mxu0 %v2459
        %2556 = vmatpush1.bf16.msra.mxu0 %v2458
        %2557 = vmatprep.subr.bf16.mxu0 %v2466
        %2558 = vmatpush1.bf16.msra.mxu0 %v2465
        %2559 = vmatprep.subr.bf16.mxu0 %v2473
        %2560 = vmatpush1.bf16.msra.mxu0 %v2472
        %2561 = vmatprep.subr.bf16.mxu0 %v2480
        %2562 = vmatpush1.bf16.msra.mxu0 %v2479
        %2563 = vmatprep.subr.bf16.mxu0 %v2487
        %2564 = vmatpush1.bf16.msra.mxu0 %v2486
        %2565 = vmatprep.subr.bf16.mxu0 0
        %2566 = vmatpush1.bf16.msra.mxu0 0
        %2567 = vmatprep.subr.bf16.mxu0 0
        %2568 = vmatpush1.bf16.msra.mxu0 0
        %2569 = vmatprep.subr.bf16.mxu0 0
        %2570 = vmatpush1.bf16.msra.mxu0 0
        %2571 = vmatprep.subr.bf16.mxu0 0
        %2572 = vmatpush1.bf16.msra.mxu0 0
        %2573 = vmatprep.subr.bf16.mxu0 0
        %2574 = vmatpush1.bf16.msra.mxu0 0
        %2575 = vmatprep.subr.bf16.mxu0 0
        %2576 = vmatpush1.bf16.msra.mxu0 0
        %2577 = vmatprep.subr.bf16.mxu0 0
        %2578 = vmatpush1.bf16.msra.mxu0 0
        %2579 = vmatprep.subr.bf16.mxu0 0
        %2580 = vmatpush1.bf16.msra.mxu0 0
        %2581 = vmatprep.mubr.bf16.mxu0 0
        %2582 = vmatmul.mubr.bf16.gmra.mrb[0].mxu0 %v2159
        %v2583 = vpop.f32.mrb[0].mxu0
        %v2584 = vadd.f32 %v2229, %v2583
        %v2585 = vpop.f32.mrb[0].mxu0
        %v2586 = vadd.f32 %v2233, %v2585
        %v2587 = vpop.f32.mrb[0].mxu0
        %v2588 = vpop.f32.mrb[0].mxu0
        %2589 = vdwg.mxu0
        %2590 = vmatprep.subr.bf16.mxu0 %v2440
        %2591 = vmatpush1.bf16.msra.mxu0 %v2439
        %2592 = vmatprep.subr.bf16.mxu0 %v2447
        %2593 = vmatpush1.bf16.msra.mxu0 %v2446
        %2594 = vmatprep.subr.bf16.mxu0 %v2454
        %2595 = vmatpush1.bf16.msra.mxu0 %v2453
        %2596 = vmatprep.subr.bf16.mxu0 %v2461
        %2597 = vmatpush1.bf16.msra.mxu0 %v2460
        %2598 = vmatprep.subr.bf16.mxu0 %v2468
        %2599 = vmatpush1.bf16.msra.mxu0 %v2467
        %2600 = vmatprep.subr.bf16.mxu0 %v2475
        %2601 = vmatpush1.bf16.msra.mxu0 %v2474
        %2602 = vmatprep.subr.bf16.mxu0 %v2482
        %2603 = vmatpush1.bf16.msra.mxu0 %v2481
        %2604 = vmatprep.subr.bf16.mxu0 %v2489
        %2605 = vmatpush1.bf16.msra.mxu0 %v2488
        %2606 = vmatprep.subr.bf16.mxu0 0
        %2607 = vmatpush1.bf16.msra.mxu0 0
        %2608 = vmatprep.subr.bf16.mxu0 0
        %2609 = vmatpush1.bf16.msra.mxu0 0
        %2610 = vmatprep.subr.bf16.mxu0 0
        %2611 = vmatpush1.bf16.msra.mxu0 0
        %2612 = vmatprep.subr.bf16.mxu0 0
        %2613 = vmatpush1.bf16.msra.mxu0 0
        %2614 = vmatprep.subr.bf16.mxu0 0
        %2615 = vmatpush1.bf16.msra.mxu0 0
        %2616 = vmatprep.subr.bf16.mxu0 0
        %2617 = vmatpush1.bf16.msra.mxu0 0
        %2618 = vmatprep.subr.bf16.mxu0 0
        %2619 = vmatpush1.bf16.msra.mxu0 0
        %2620 = vmatprep.subr.bf16.mxu0 0
        %2621 = vmatpush1.bf16.msra.mxu0 0
        %2622 = vmatprep.mubr.bf16.mxu0 0
        %2623 = vmatmul.mubr.bf16.gmra.mrb[0].mxu0 %v2159
        %v2624 = vpop.f32.mrb[0].mxu0
        %v2625 = vadd.f32 %v2237, %v2624
        %v2626 = vpop.f32.mrb[0].mxu0
        %v2627 = vadd.f32 %v2241, %v2626
        %v2628 = vpop.f32.mrb[0].mxu0
        %v2629 = vpop.f32.mrb[0].mxu0
        %2630 = vdwg.mxu0
        %2631 = vmatprep.subr.bf16.mxu0 %v2442
        %2632 = vmatpush1.bf16.msra.mxu0 %v2441
        %2633 = vmatprep.subr.bf16.mxu0 %v2449
        %2634 = vmatpush1.bf16.msra.mxu0 %v2448
        %2635 = vmatprep.subr.bf16.mxu0 %v2456
        %2636 = vmatpush1.bf16.msra.mxu0 %v2455
        %2637 = vmatprep.subr.bf16.mxu0 %v2463
        %2638 = vmatpush1.bf16.msra.mxu0 %v2462
        %2639 = vmatprep.subr.bf16.mxu0 %v2470
        %2640 = vmatpush1.bf16.msra.mxu0 %v2469
        %2641 = vmatprep.subr.bf16.mxu0 %v2477
        %2642 = vmatpush1.bf16.msra.mxu0 %v2476
        %2643 = vmatprep.subr.bf16.mxu0 %v2484
        %2644 = vmatpush1.bf16.msra.mxu0 %v2483
        %2645 = vmatprep.subr.bf16.mxu0 %v2491
        %2646 = vmatpush1.bf16.msra.mxu0 %v2490
        %2647 = vmatprep.subr.bf16.mxu0 0
        %2648 = vmatpush1.bf16.msra.mxu0 0
        %2649 = vmatprep.subr.bf16.mxu0 0
        %2650 = vmatpush1.bf16.msra.mxu0 0
        %2651 = vmatprep.subr.bf16.mxu0 0
        %2652 = vmatpush1.bf16.msra.mxu0 0
        %2653 = vmatprep.subr.bf16.mxu0 0
        %2654 = vmatpush1.bf16.msra.mxu0 0
        %2655 = vmatprep.subr.bf16.mxu0 0
        %2656 = vmatpush1.bf16.msra.mxu0 0
        %2657 = vmatprep.subr.bf16.mxu0 0
        %2658 = vmatpush1.bf16.msra.mxu0 0
        %2659 = vmatprep.subr.bf16.mxu0 0
        %2660 = vmatpush1.bf16.msra.mxu0 0
        %2661 = vmatprep.subr.bf16.mxu0 0
        %2662 = vmatpush1.bf16.msra.mxu0 0
        %2663 = vmatprep.mubr.bf16.mxu0 0
        %2664 = vmatmul.mubr.bf16.gmra.mrb[0].mxu0 %v2159
        %v2665 = vpop.f32.mrb[0].mxu0
        %v2666 = vadd.f32 %v2245, %v2665
        %v2667 = vpop.f32.mrb[0].mxu0
        %v2668 = vadd.f32 %v2249, %v2667
        %v2669 = vpop.f32.mrb[0].mxu0
        %v2670 = vpop.f32.mrb[0].mxu0
        %2671 = vdwg.mxu0
        %2672 = vmatprep.subr.bf16.mxu0 0
        %2673 = vmatpush1.bf16.msra.mxu0 %v2443
        %2674 = vmatprep.subr.bf16.mxu0 0
        %2675 = vmatpush1.bf16.msra.mxu0 %v2450
        %2676 = vmatprep.subr.bf16.mxu0 0
        %2677 = vmatpush1.bf16.msra.mxu0 %v2457
        %2678 = vmatprep.subr.bf16.mxu0 0
        %2679 = vmatpush1.bf16.msra.mxu0 %v2464
        %2680 = vmatprep.subr.bf16.mxu0 0
        %2681 = vmatpush1.bf16.msra.mxu0 %v2471
        %2682 = vmatprep.subr.bf16.mxu0 0
        %2683 = vmatpush1.bf16.msra.mxu0 %v2478
        %2684 = vmatprep.subr.bf16.mxu0 0
        %2685 = vmatpush1.bf16.msra.mxu0 %v2485
        %2686 = vmatprep.subr.bf16.mxu0 0
        %2687 = vmatpush1.bf16.msra.mxu0 %v2492
        %2688 = vmatprep.subr.bf16.mxu0 0
        %2689 = vmatpush1.bf16.msra.mxu0 0
        %2690 = vmatprep.subr.bf16.mxu0 0
        %2691 = vmatpush1.bf16.msra.mxu0 0
        %2692 = vmatprep.subr.bf16.mxu0 0
        %2693 = vmatpush1.bf16.msra.mxu0 0
        %2694 = vmatprep.subr.bf16.mxu0 0
        %2695 = vmatpush1.bf16.msra.mxu0 0
        %2696 = vmatprep.subr.bf16.mxu0 0
        %2697 = vmatpush1.bf16.msra.mxu0 0
        %2698 = vmatprep.subr.bf16.mxu0 0
        %2699 = vmatpush1.bf16.msra.mxu0 0
        %2700 = vmatprep.subr.bf16.mxu0 0
        %2701 = vmatpush1.bf16.msra.mxu0 0
        %2702 = vmatprep.subr.bf16.mxu0 0
        %2703 = vmatpush1.bf16.msra.mxu0 0
        %2704 = vmatprep.mubr.bf16.mxu0 0
        %2705 = vmatmul.mubr.bf16.gmra.mrb[0].mxu0 %v2159
        %v2706 = vpop.f32.mrb[0].mxu0
        %v2707 = vadd.f32 %v2253, %v2706
        %v2708 = vpop.f32.mrb[0].mxu0
        %v2709 = vpop.f32.mrb[0].mxu0
        %v2710 = vpop.f32.mrb[0].mxu0
        %2711 = vdwg.mxu0
        %v2712 = vxor.u32 %v2584, 2147483648
        %v2713 = vxor.u32 %v2586, 2147483648
        %v2714 = vxor.u32 %v2625, 2147483648
        %v2715 = vxor.u32 %v2627, 2147483648
        %v2716 = vxor.u32 %v2666, 2147483648
        %v2717 = vxor.u32 %v2668, 2147483648
        %v2718 = vxor.u32 %v2707, 2147483648
        %v2719 = vmul.f32 %v2712, 1.442695
        %v2720 = vpow.pop %v2719
        %v2721 = vmul.f32 %v2713, 1.442695
        %v2722 = vpow.pop %v2721
        %v2723 = vmul.f32 %v2714, 1.442695
        %v2724 = vpow.pop %v2723
        %v2725 = vmul.f32 %v2715, 1.442695
        %v2726 = vpow.pop %v2725
        %v2727 = vmul.f32 %v2716, 1.442695
        %v2728 = vpow.pop %v2727
        %v2729 = vmul.f32 %v2717, 1.442695
        %v2730 = vpow.pop %v2729
        %v2731 = vmul.f32 %v2718, 1.442695
        %v2732 = vpow.pop %v2731
        %v2733 = vadd.f32 %v2720, 1.0
        %v2734 = vadd.f32 %v2722, 1.0
        %v2735 = vadd.f32 %v2724, 1.0
        %v2736 = vadd.f32 %v2726, 1.0
        %v2737 = vadd.f32 %v2728, 1.0
        %v2738 = vadd.f32 %v2730, 1.0
        %v2739 = vadd.f32 %v2732, 1.0
        %v2740 = vrcp.pop %v2733
        %v2741 = vmul.f32 1.0, %v2740
        %v2742 = vrcp.pop %v2734
        %v2743 = vmul.f32 1.0, %v2742
        %v2744 = vrcp.pop %v2735
        %v2745 = vmul.f32 1.0, %v2744
        %v2746 = vrcp.pop %v2736
        %v2747 = vmul.f32 1.0, %v2746
        %v2748 = vrcp.pop %v2737
        %v2749 = vmul.f32 1.0, %v2748
        %v2750 = vrcp.pop %v2738
        %v2751 = vmul.f32 1.0, %v2750
        %v2752 = vrcp.pop %v2739
        %v2753 = vmul.f32 1.0, %v2752
        %2754 = vst [vmem:[%s395] sm:$0xff] %v2741
        %2755 = vst [vmem:[%s395 + $0x8] sm:$0xff] %v2743
        %2756 = vst [vmem:[%s395 + $0x10] sm:$0xff] %v2745
        %2757 = vst [vmem:[%s395 + $0x18] sm:$0xff] %v2747
        %2758 = vst [vmem:[%s395 + $0x20] sm:$0xff] %v2749
        %2759 = vst [vmem:[%s395 + $0x28] sm:$0xff] %v2751
        %2760 = vst [vmem:[%s395 + $0x30] sm:$0xff] %v2753
        %p2761 = scmp.lt.s32.totalorder %s26, 1
        %s2762 = scalar_select %p2761, %s26, 1
        %s2763 = smul.addr %s2762, 8
        %s2764 = scalar_lea.vmem %s7, %s2763
        %p2765 = scmp.lt.s32.totalorder %s26, 1
        %s2766 = scalar_select %p2765, %s26, 1
        %s2767 = smul.addr %s2766, 8
        %s2768 = scalar_lea.vmem %s8, %s2767
        %s2769 = sand.u32 %s243, 1
        %s2770 = scalar_lea.sflag [#allocation4], %s2769
        %s2771 = sand.u32 %s243, 1
        %s2772 = smul.addr %s2771, 56
        %s2773 = scalar_lea.vmem [#allocation8], %s2772
        // Predicated region
        $region61: #{vae_forward.1} parent=47 // pred_check
          %p2774 = pneg %p201
        $region62: #{vae_forward.1} parent=47 // pred_check_branch
          %2776 = sbr.rel (%p2774) target = $region64
        $region63: #{vae_forward.1} parent=47 // pred_region
          _
        $region64: #{vae_forward.1} parent=47 // pred_fallthru
          _
        // Predicated region
        $region65: #{vae_forward.1} parent=47 // pred_check
          %p2777 = pneg %p227
        $region66: #{vae_forward.1} parent=47 // pred_check_branch
          %2779 = sbr.rel (%p2777) target = $region68
        $region67: #{vae_forward.1} parent=47 // pred_region
          _
        $region68: #{vae_forward.1} parent=47 // pred_fallthru
          _
        // Predicated region
        $region69: #{vae_forward.1} parent=47 // pred_check
          %p2780 = pneg %p253
        $region70: #{vae_forward.1} parent=47 // pred_check_branch
          %2782 = sbr.rel (%p2780) target = $region72
        $region71: #{vae_forward.1} parent=47 // pred_region
          %s2784 = ssub.s32 896, 896
          %2785 = vsyncadd %s2770, %s2784
          %s2786 = smul.addr %s26, 7
          %s2787 = smul.addr %s2786, 128
          %s2788 = scalar_lea.hbm %s9, %s2787
          %s2790 = sshll.u32 %s2773, 4
          %s2791 = int_to_ptr.vmem [resolvable:$true] %s2790
          %2793 = dma.vmem_to_hbm [thread:$0]  %s2791, 896, %s2788, %s2770
        $region72: #{vae_forward.1} parent=47 // pred_fallthru
          _
      $region48: #{vae_forward.1} parent=5 // pred_fallthru
        _
      %p2794 = scmp.le.s32.totalorder 2, %s21
      // Predicated region
      $region73: #{vae_forward.1} parent=5 // pred_check
        %p2795 = pneg %p2794
      $region74: #{vae_forward.1} parent=5 // pred_check_branch
        %2797 = sbr.rel (%p2795) target = $region76
      $region75: #{vae_forward.1} parent=5 // pred_region
        %s2798 = ssub.s32 %s21, 2
        // Predicated region
        $region77: #{vae_forward.1} parent=75 // pred_check
          %p2799 = pneg %p207
        $region78: #{vae_forward.1} parent=75 // pred_check_branch
          %2801 = sbr.rel (%p2799) target = $region80
        $region79: #{vae_forward.1} parent=75 // pred_region
          %p2802 = scmp.lt.s32.totalorder %s27, 1
          %s2803 = scalar_select %p2802, %s27, 1
          %s2804 = smul.addr %s2803, 8
          %s2805 = scalar_lea.vmem %s7, %s2804
        $region80: #{vae_forward.1} parent=75 // pred_fallthru
          _
        // Predicated region
        $region81: #{vae_forward.1} parent=75 // pred_check
          %p2806 = pneg %p233
        $region82: #{vae_forward.1} parent=75 // pred_check_branch
          %2808 = sbr.rel (%p2806) target = $region84
        $region83: #{vae_forward.1} parent=75 // pred_region
          %p2809 = scmp.lt.s32.totalorder %s27, 1
          %s2810 = scalar_select %p2809, %s27, 1
          %s2811 = smul.addr %s2810, 8
          %s2812 = scalar_lea.vmem %s8, %s2811
        $region84: #{vae_forward.1} parent=75 // pred_fallthru
          _
        // Predicated region
        $region85: #{vae_forward.1} parent=75 // pred_check
          %p2813 = pneg %p259
        $region86: #{vae_forward.1} parent=75 // pred_check_branch
          %2815 = sbr.rel (%p2813) target = $region88
        $region87: #{vae_forward.1} parent=75 // pred_region
          %s2816 = sand.u32 %s244, 1
          %s2817 = scalar_lea.sflag [#allocation4], %s2816
          %s2818 = sand.u32 %s244, 1
          %s2819 = smul.addr %s2818, 56
          %s2820 = scalar_lea.vmem [#allocation8], %s2819
          %2821 = dma.done %s2817, 896
        $region88: #{vae_forward.1} parent=75 // pred_fallthru
          _
      $region76: #{vae_forward.1} parent=5 // pred_fallthru
        _
    $region6: #{vae_forward.1} parent=1 // loop_footer
      %s25 = sadd.s32 1, %s21
    $region7: #{vae_forward.1} parent=1 // loop_footer_branch
      %20 = sbr.rel target = $region3
    $region8: #{vae_forward.1} parent=1 // loop_exit
      _
    %2822 = vsyncpa [#allocation3], 1
    %s2823 = scalar_lea.sflag [#allocation3], 1
    %2824 = vsyncpa %s2823, 1
    %2825 = vsyncpa [#allocation6], 1
    %2826 = vsyncpa [#allocation4], 1
    %s2827 = scalar_lea.sflag [#allocation4], 1
    %2828 = vsyncpa %s2827, 1

</llo_original>
